<compile_context>
chip_gen: v7x
topology: tpu7x:2x2x1
jax: 0.10.0
libtpu: 0.0.40
codegen_flags: <defaults>
</compile_context>

<pallas_src>
import functools

import jax
import jax.numpy as jnp
import numpy as np
from jax.experimental import pallas as pl
from jax.experimental.pallas import tpu as pltpu


# ---------------------------------------------------------------------------
# Kernel bodies
# ---------------------------------------------------------------------------

def _attention_core(qkv_ref, hcat_ref, a_ref, *, num_heads, d_k, tb, L,
                    compute_dtype):
    """Scaled-dot-product attention on the packed QKV slab.

    qkv_ref  : (3*d_model, tb*L) f32 scratch -- packed projections (1/sqrt(d_k)
               already folded into the Q rows by the wrapper).
    hcat_ref : (d_model, tb*L)   f32 scratch -- group_heads(A @ V), packed.
    a_ref    : (tb, num_heads, L, L) output block -- attention probabilities.

    Static unroll over the tb batch elements with static lane offsets b*L;
    every iteration only reads/writes refs, so its intermediates are dead at
    the end of the iteration.  tb is bounded by the VMEM-aware picker.
    """
    d_model = num_heads * d_k
    for b in range(tb):
        c0 = b * L
        q = qkv_ref[0:d_model, c0:c0 + L].reshape(num_heads, d_k, L)
        k = qkv_ref[d_model:2 * d_model, c0:c0 + L].reshape(num_heads, d_k, L)
        v = qkv_ref[2 * d_model:3 * d_model, c0:c0 + L].reshape(num_heads, d_k, L)
        q = q.astype(compute_dtype)
        k = k.astype(compute_dtype)
        v = v.astype(compute_dtype)

        # scores[h, i, j] = sum_d q[h, d, i] * k[h, d, j]   (head-batched MXU)
        s = jax.lax.dot_general(q, k, (((1,), (1,)), ((0,), (0,))),
                                preferred_element_type=jnp.float32)

        # Exact, numerically stable softmax over the key axis (A is a module
        # output -> no approximate reciprocal here).
        s = s - jnp.max(s, axis=-1, keepdims=True)
        e = jnp.exp(s)
        A = e / jnp.sum(e, axis=-1, keepdims=True)
        a_ref[b] = A.astype(a_ref.dtype)

        # group_heads applied on the fly: hh[h, d, i] = sum_j v[h,d,j]*A[h,i,j]
        hh = jax.lax.dot_general(v, A.astype(compute_dtype),
                                 (((2,), (2,)), ((0,), (0,))),
                                 preferred_element_type=jnp.float32)
        hcat_ref[:, c0:c0 + L] = hh.reshape(d_model, L)


def _finalize(hcat_ref, wh_ref, bh_ref, h_ref, compute_dtype):
    """Packed output projection: one matmul + one bias broadcast per step."""
    hcat = hcat_ref[...].astype(compute_dtype)
    h_ref[...] = (jnp.dot(wh_ref[...], hcat, preferred_element_type=jnp.float32)
                  + bh_ref[...]).astype(h_ref.dtype)


def _mha_kernel_self(x_ref, wqkv_ref, wh_ref, bh_ref, h_ref, a_ref,
                     qkv_ref, hcat_ref, *, num_heads, d_k, tb, L,
                     compute_dtype):
    """Self-attention path: one fused, lane-packed QKV projection per step."""
    qkv_ref[...] = jnp.dot(wqkv_ref[...], x_ref[...],
                           preferred_element_type=jnp.float32)
    _attention_core(qkv_ref, hcat_ref, a_ref, num_heads=num_heads, d_k=d_k,
                    tb=tb, L=L, compute_dtype=compute_dtype)
    _finalize(hcat_ref, wh_ref, bh_ref, h_ref, compute_dtype)


def _mha_kernel_cross(xq_ref, xk_ref, xv_ref, wq_ref, wk_ref, wv_ref,
                      wh_ref, bh_ref, h_ref, a_ref, qkv_ref, hcat_ref,
                      *, num_heads, d_k, tb, L, compute_dtype):
    """General path (distinct Q/K/V inputs): three packed projections."""
    d_model = num_heads * d_k
    qkv_ref[0:d_model, :] = jnp.dot(
        wq_ref[...], xq_ref[...], preferred_element_type=jnp.float32)
    qkv_ref[d_model:2 * d_model, :] = jnp.dot(
        wk_ref[...], xk_ref[...], preferred_element_type=jnp.float32)
    qkv_ref[2 * d_model:3 * d_model, :] = jnp.dot(
        wv_ref[...], xv_ref[...], preferred_element_type=jnp.float32)
    _attention_core(qkv_ref, hcat_ref, a_ref, num_heads=num_heads, d_k=d_k,
                    tb=tb, L=L, compute_dtype=compute_dtype)
    _finalize(hcat_ref, wh_ref, bh_ref, h_ref, compute_dtype)


# ---------------------------------------------------------------------------
# Wrapper
# ---------------------------------------------------------------------------

def _vmem_capacity_bytes():
    """Physical VMEM per core; conservative (v7x, 64 MiB) fallback."""
    try:
        cap = getattr(pltpu.get_tpu_info(), "vmem_capacity_bytes", None)
        if cap:
            return int(cap)
    except Exception:
        pass
    return 64 * 1024 * 1024


def _pick_block_batch(B, L, footprint_bytes, vmem_budget, block_batch=None):
    """Pick batch elements per grid step.

    Constraints:
      * tb divides B
      * the packed lane width tb*L is a multiple of 128 (lane-dense, aligned
        DMA/stores) OR tb == B (block equals the full packed axis)
      * the per-step VMEM footprint fits the generation-aware budget.
    Grid pipelining / megacore sharding is secondary to MXU lane packing at
    these sizes, so we simply take the largest fitting tb.
    """
    def valid(tb):
        return B % tb == 0 and (tb == B or (tb * L) % 128 == 0)

    if block_batch is not None:
        if not valid(block_batch):
            raise ValueError(
                "block_batch must divide B and give a 128-multiple (or full) "
                "packed lane width")
        return block_batch

    cands = [tb for tb in range(1, B + 1) if valid(tb)]
    fitting = [tb for tb in cands if footprint_bytes(tb) <= vmem_budget]
    return max(fitting) if fitting else min(cands)


def mha_forward(xq, xk, xv, wq, wk, wv, wh, bh, num_heads,
                *, block_batch=None, matmul_dtype=None, a_dtype=None):
    """Pallas forward for MultiHeadAttention.

    xq/xk/xv : (B, d_x*, L) NCL inputs.   wq/wk/wv : (d_model, d_x*).
    wh : (d_model, d_model).  bh : (d_model,).
    matmul_dtype : optional MXU operand dtype (e.g. jnp.bfloat16 on v6e/v7x);
                   accumulation and softmax stay float32.  Default float32
                   keeps exact parity with the PyTorch module.
    a_dtype      : optional dtype for the (B, H, L, L) attention output
                   (bf16 halves the dominant HBM writeback).
    Returns (H, A) with H: (B, d_model, L), A: (B, num_heads, L, L).
    """
    B, d_xq, L = xq.shape
    _, d_xk, _ = xk.shape
    _, d_xv, _ = xv.shape
    d_model = wq.shape[0]
    assert d_model % num_heads == 0, "d_model must be divisible by num_heads"
    d_k = d_model // num_heads
    scale = 1.0 / float(np.sqrt(d_k))

    compute_dtype = (jnp.dtype(matmul_dtype) if matmul_dtype is not None
                     else jnp.dtype(jnp.float32))
    out_dtype = xq.dtype
    a_out_dtype = jnp.dtype(a_dtype) if a_dtype is not None else out_dtype

    self_attention = (xq is xk) and (xq is xv)
    d_ins = (d_xq,) if self_attention else (d_xq, d_xk, d_xv)

    # --- VMEM-aware block sizing + scoped-VMEM limit --------------------------
    x_itemsize = compute_dtype.itemsize
    w_itemsize = compute_dtype.itemsize
    a_itemsize = a_out_dtype.itemsize
    h_itemsize = jnp.dtype(out_dtype).itemsize
    if self_attention:
        weight_elems = 3 * d_model * d_xq + d_model * d_model + d_model
    else:
        weight_elems = d_model * (d_xq + d_xk + d_xv) + d_model * d_model + d_model

    def footprint_bytes(tb):
        cols = tb * L
        f = sum(d_ins) * cols * x_itemsize * 2            # input blocks (2-buf)
        f += weight_elems * w_itemsize * 2                # resident weights
        f += 3 * d_model * cols * 4                       # qkv scratch (f32)
        f += d_model * cols * 4                           # hcat scratch (f32)
        f += d_model * cols * h_itemsize * 2              # H out block (2-buf)
        f += tb * num_heads * L * L * a_itemsize * 2      # A out block (2-buf)
        f += 4 * num_heads * L * L * 4                    # in-flight scores/exp/A
        return f

    vmem_cap = _vmem_capacity_bytes()
    tb = _pick_block_batch(B, L, footprint_bytes, int(0.45 * vmem_cap),
                           block_batch)
    grid = (B // tb,)
    cols = tb * L
    vmem_limit = int(0.75 * vmem_cap)

    # --- weight / input preparation (wrapper-side, layout plumbing only) ------
    wq_s = wq * scale                         # fold 1/sqrt(d_k) into W_q (free)
    wh_c = wh.astype(compute_dtype)
    bh2 = bh.reshape(d_model, 1).astype(jnp.float32)

    def pack(x):                              # (B, d, L) -> (d, B*L), col = b*L+i
        d = x.shape[1]
        return jnp.transpose(x, (1, 0, 2)).reshape(d, B * L).astype(compute_dtype)

    out_shape = (jax.ShapeDtypeStruct((d_model, B * L), out_dtype),
                 jax.ShapeDtypeStruct((B, num_heads, L, L), a_out_dtype))
    out_specs = [pl.BlockSpec((d_model, cols), lambda i: (0, i)),
                 pl.BlockSpec((tb, num_heads, L, L), lambda i: (i, 0, 0, 0))]
    scratch_shapes = [pltpu.VMEM((3 * d_model, cols), jnp.float32),
                      pltpu.VMEM((d_model, cols), jnp.float32)]
    cparams = pltpu.CompilerParams(dimension_semantics=("parallel",),
                                   vmem_limit_bytes=vmem_limit)

    if self_attention:
        # Fused projection: stack scaled W_q / W_k / W_v once in the wrapper.
        wqkv = jnp.concatenate([wq_s, wk, wv], axis=0).astype(compute_dtype)
        kernel = functools.partial(_mha_kernel_self, num_heads=num_heads,
                                   d_k=d_k, tb=tb, L=L,
                                   compute_dtype=compute_dtype)
        h_packed, A = pl.pallas_call(
            kernel,
            out_shape=out_shape,
            grid_spec=pltpu.PrefetchScalarGridSpec(
                num_scalar_prefetch=0,
                grid=grid,
                in_specs=[
                    pl.BlockSpec((d_xq, cols), lambda i: (0, i)),
                    pl.BlockSpec((3 * d_model, d_xq), lambda i: (0, 0)),
                    pl.BlockSpec((d_model, d_model), lambda i: (0, 0)),
                    pl.BlockSpec((d_model, 1), lambda i: (0, 0)),
                ],
                out_specs=out_specs,
                scratch_shapes=scratch_shapes),
            compiler_params=cparams,
        )(pack(xq), wqkv, wh_c, bh2)
    else:
        kernel = functools.partial(_mha_kernel_cross, num_heads=num_heads,
                                   d_k=d_k, tb=tb, L=L,
                                   compute_dtype=compute_dtype)
        h_packed, A = pl.pallas_call(
            kernel,
            out_shape=out_shape,
            grid_spec=pltpu.PrefetchScalarGridSpec(
                num_scalar_prefetch=0,
                grid=grid,
                in_specs=[
                    pl.BlockSpec((d_xq, cols), lambda i: (0, i)),
                    pl.BlockSpec((d_xk, cols), lambda i: (0, i)),
                    pl.BlockSpec((d_xv, cols), lambda i: (0, i)),
                    pl.BlockSpec((d_model, d_xq), lambda i: (0, 0)),
                    pl.BlockSpec((d_model, d_xk), lambda i: (0, 0)),
                    pl.BlockSpec((d_model, d_xv), lambda i: (0, 0)),
                    pl.BlockSpec((d_model, d_model), lambda i: (0, 0)),
                    pl.BlockSpec((d_model, 1), lambda i: (0, 0)),
                ],
                out_specs=out_specs,
                scratch_shapes=scratch_shapes),
            compiler_params=cparams,
        )(pack(xq), pack(xk), pack(xv),
          wq_s.astype(compute_dtype), wk.astype(compute_dtype),
          wv.astype(compute_dtype), wh_c, bh2)

    # Unpack the lane-dense H slab back to (B, d_model, L) -- layout plumbing.
    H = jnp.transpose(h_packed.reshape(d_model, B, L), (1, 0, 2))
    return H, A


# ---------------------------------------------------------------------------
# Pure-JAX reference (mirrors the PyTorch forward exactly)
# ---------------------------------------------------------------------------

def mha_reference(xq, xk, xv, wq, wk, wv, wh, bh, num_heads):
    B, _, L = xq.shape
    d_model = wq.shape[0]
    d_k = d_model // num_heads
    Q = jnp.einsum('oi,bil->bol', wq, xq).reshape(B, num_heads, d_k, L)
    K = jnp.einsum('oi,bil->bol', wk, xk).reshape(B, num_heads, d_k, L)
    V = jnp.einsum('oi,bil->bol', wv, xv).reshape(B, num_heads, d_k, L)
    scores = jnp.einsum('bhdq,bhdk->bhqk', Q / np.sqrt(d_k), K)
    A = jax.nn.softmax(scores, axis=-1)
    Hh = jnp.einsum('bhqk,bhdk->bhdq', A, V)          # post group_heads layout
    Hcat = Hh.reshape(B, d_model, L)
    Hout = jnp.einsum('oi,bil->bol', wh, Hcat) + bh[None, :, None]
    return Hout, A


def xavier_uniform(key, shape):
    fan_out, fan_in = shape
    bound = float(np.sqrt(6.0 / (fan_in + fan_out)))
    return jax.random.uniform(key, shape, jnp.float32, -bound, bound)


def _check(got, want, rtol=1e-2, atol=5e-3):
    np.testing.assert_allclose(np.asarray(got), np.asarray(want),
                               rtol=rtol, atol=atol)


if __name__ == "__main__":
    d_model, num_heads, L = 32, 4, 16   # d_input=None -> d_xq=d_xk=d_xv=d_model
    key = jax.random.PRNGKey(0)
    (k_wq, k_wk, k_wv, k_wh, k_x, k_xk, k_xv, k_xb,
     k_wq2, k_wk2, k_wv2, k_wh2, k_x2) = jax.random.split(key, 13)

    wq = xavier_uniform(k_wq, (d_model, d_model))
    wk = xavier_uniform(k_wk, (d_model, d_model))
    wv = xavier_uniform(k_wv, (d_model, d_model))
    wh = xavier_uniform(k_wh, (d_model, d_model))
    bh = jnp.zeros((d_model,), jnp.float32)   # nn.init.constant_(bias, 0.0)

    # 1) Self-attention (fused packed QKV projection), B=2.
    x = jax.random.normal(k_x, (2, d_model, L), jnp.float32)
    H1, A1 = jax.block_until_ready(
        mha_forward(x, x, x, wq, wk, wv, wh, bh, num_heads))
    H1_ref, A1_ref = mha_reference(x, x, x, wq, wk, wv, wh, bh, num_heads)
    _check(A1, A1_ref)
    _check(H1, H1_ref)

    # 2) Cross-attention (distinct Q/K/V inputs), general path.
    xq = jax.random.normal(k_x, (2, d_model, L), jnp.float32)
    xk_in = jax.random.normal(k_xk, (2, d_model, L), jnp.float32)
    xv_in = jax.random.normal(k_xv, (2, d_model, L), jnp.float32)
    H2, A2 = jax.block_until_ready(
        mha_forward(xq, xk_in, xv_in, wq, wk, wv, wh, bh, num_heads))
    H2_ref, A2_ref = mha_reference(xq, xk_in, xv_in, wq, wk, wv, wh, bh, num_heads)
    _check(A2, A2_ref)
    _check(H2, H2_ref)

    # 3) B=8 -> block_batch=8: packed lane width 8*16 = 128 (lane-dense,
    #    unmasked H stores, full-width MXU matmuls).
    xb = jax.random.normal(k_xb, (8, d_model, L), jnp.float32)
    H3, A3 = jax.block_until_ready(
        mha_forward(xb, xb, xb, wq, wk, wv, wh, bh, num_heads))
    H3_ref, A3_ref = mha_reference(xb, xb, xb, wq, wk, wv, wh, bh, num_heads)
    _check(A3, A3_ref)
    _check(H3, H3_ref)

    # 4) bf16 MXU operands (wrapper-precast weights) at MXU-friendly sizes.
    d_model2, heads2, L2 = 128, 4, 128
    wq2 = xavier_uniform(k_wq2, (d_model2, d_model2))
    wk2 = xavier_uniform(k_wk2, (d_model2, d_model2))
    wv2 = xavier_uniform(k_wv2, (d_model2, d_model2))
    wh2 = xavier_uniform(k_wh2, (d_model2, d_model2))
    bh2v = jnp.zeros((d_model2,), jnp.float32)
    x2 = jax.random.normal(k_x2, (2, d_model2, L2), jnp.float32)
    H4, A4 = jax.block_until_ready(
        mha_forward(x2, x2, x2, wq2, wk2, wv2, wh2, bh2v, heads2,
                    matmul_dtype=jnp.bfloat16))
    H4_ref, A4_ref = mha_reference(x2, x2, x2, wq2, wk2, wv2, wh2, bh2v, heads2)
    _check(A4, A4_ref, rtol=5e-2, atol=2e-2)
    _check(H4, H4_ref, rtol=5e-2, atol=3e-2)

    print("KERNEL_OK")
</pallas_src>

<mosaic_0001>
module attributes {stable_mosaic.version = 11 : i64} {
  func.func @_mha_kernel_self(%arg0: i32, %arg1: memref<32x32xf32, #tpu.memory_space<vmem>>, %arg2: memref<96x32xf32, #tpu.memory_space<vmem>>, %arg3: memref<32x32xf32, #tpu.memory_space<vmem>>, %arg4: memref<32x1xf32, #tpu.memory_space<vmem>>, %arg5: memref<32x32xf32, #tpu.memory_space<vmem>>, %arg6: memref<2x4x16x16xf32, #tpu.memory_space<vmem>>, %arg7: memref<96x32xf32, #tpu.memory_space<vmem>>, %arg8: memref<32x32xf32, #tpu.memory_space<vmem>>) attributes {dimension_semantics = [#tpu.dimension_semantics<parallel>], iteration_bounds = array<i64: 1>, scalar_prefetch = 0 : i64, scratch_operands = 2 : i64, tpu.core_type = #tpu.core_type<tc>, window_params = [{transform_indices = @transform_0, window_bounds = array<i64: 32, 32>}, {pipeline_mode = #tpu.pipeline_mode<synchronous>, transform_indices = @transform_1, window_bounds = array<i64: 96, 32>}, {pipeline_mode = #tpu.pipeline_mode<synchronous>, transform_indices = @transform_2, window_bounds = array<i64: 32, 32>}, {pipeline_mode = #tpu.pipeline_mode<synchronous>, transform_indices = @transform_3, window_bounds = array<i64: 32, 1>}, {transform_indices = @transform_4, window_bounds = array<i64: 32, 32>}, {transform_indices = @transform_5, window_bounds = array<i64: 2, 4, 16, 16>}]} {
    %c0 = arith.constant 0 : index
    %c0_0 = arith.constant 0 : index
    %0 = vector.load %arg2[%c0, %c0_0] : memref<96x32xf32, #tpu.memory_space<vmem>>, vector<96x32xf32>
    %c0_1 = arith.constant 0 : index
    %c0_2 = arith.constant 0 : index
    %1 = vector.load %arg1[%c0_1, %c0_2] : memref<32x32xf32, #tpu.memory_space<vmem>>, vector<32x32xf32>
    %cst = arith.constant dense<0.000000e+00> : vector<96x32xf32>
    %2 = tpu.matmul %0, %1, %cst {dimension_numbers = #tpu.dot_dimension_numbers<[1], [0], [0], [1], [0, 0, 1, 1], [], []>} : vector<96x32xf32>, vector<32x32xf32>, vector<96x32xf32> -> vector<96x32xf32>
    %c0_3 = arith.constant 0 : index
    %c0_4 = arith.constant 0 : index
    %3 = vector.load %arg7[%c0_3, %c0_4] : memref<96x32xf32, #tpu.memory_space<vmem>>, vector<96x32xf32>
    tpu.vector_store %arg7[%c0_3, %c0_4], %2 {strides = array<i32>} : memref<96x32xf32, #tpu.memory_space<vmem>>, vector<96x32xf32>,
    %c0_5 = arith.constant 0 : index
    %c0_6 = arith.constant 0 : index
    %4 = vector.load %arg7[%c0_5, %c0_6] : memref<96x32xf32, #tpu.memory_space<vmem>>, vector<32x16xf32>
    %5 = vector.shape_cast %4 : vector<32x16xf32> to vector<4x8x16xf32>
    %c32 = arith.constant 32 : index
    %c0_7 = arith.constant 0 : index
    %6 = vector.load %arg7[%c32, %c0_7] : memref<96x32xf32, #tpu.memory_space<vmem>>, vector<32x16xf32>
    %7 = vector.shape_cast %6 : vector<32x16xf32> to vector<4x8x16xf32>
    %c64 = arith.constant 64 : index
    %c0_8 = arith.constant 0 : index
    %8 = vector.load %arg7[%c64, %c0_8] : memref<96x32xf32, #tpu.memory_space<vmem>>, vector<32x16xf32>
    %9 = vector.shape_cast %8 : vector<32x16xf32> to vector<4x8x16xf32>
    %cst_9 = arith.constant dense<0.000000e+00> : vector<4x16x16xf32>
    %10 = tpu.matmul %5, %7, %cst_9 {dimension_numbers = #tpu.dot_dimension_numbers<[1], [1], [2], [2], [0, 0, 0, 2, 1, 2], [0], [0]>} : vector<4x8x16xf32>, vector<4x8x16xf32>, vector<4x16x16xf32> -> vector<4x16x16xf32>
    %cst_10 = arith.constant dense<0xFF800000> : vector<4x16xf32>
    %11 = vector.multi_reduction <maximumf>, %10, %cst_10 [2] : vector<4x16x16xf32> to vector<4x16xf32>
    %12 = vector.shape_cast %11 : vector<4x16xf32> to vector<4x16x1xf32>
    %13 = vector.broadcast %12 : vector<4x16x1xf32> to vector<4x16x16xf32>
    %14 = arith.subf %10, %13 : vector<4x16x16xf32>
    %15 = math.exp %14 : vector<4x16x16xf32>
    %cst_11 = arith.constant dense<0.000000e+00> : vector<4x16xf32>
    %16 = vector.multi_reduction <add>, %15, %cst_11 [2] : vector<4x16x16xf32> to vector<4x16xf32>
    %17 = vector.shape_cast %16 : vector<4x16xf32> to vector<4x16x1xf32>
    %18 = vector.broadcast %17 : vector<4x16x1xf32> to vector<4x16x16xf32>
    %19 = arith.divf %15, %18 : vector<4x16x16xf32>
    %c0_12 = arith.constant 0 : index
    %c0_13 = arith.constant 0 : index
    %c0_14 = arith.constant 0 : index
    %c0_15 = arith.constant 0 : index
    %20 = vector.load %arg6[%c0_12, %c0_13, %c0_14, %c0_15] : memref<2x4x16x16xf32, #tpu.memory_space<vmem>>, vector<1x4x16x16xf32>
    %21 = vector.shape_cast %20 : vector<1x4x16x16xf32> to vector<4x16x16xf32>
    %22 = vector.shape_cast %19 : vector<4x16x16xf32> to vector<1x4x16x16xf32>
    tpu.vector_store %arg6[%c0_12, %c0_13, %c0_14, %c0_15], %22 {strides = array<i32>} : memref<2x4x16x16xf32, #tpu.memory_space<vmem>>, vector<1x4x16x16xf32>,
    %cst_16 = arith.constant dense<0.000000e+00> : vector<4x8x16xf32>
    %23 = tpu.matmul %9, %19, %cst_16 {dimension_numbers = #tpu.dot_dimension_numbers<[2], [2], [1], [1], [0, 0, 0, 1, 1, 1], [0], [0]>} : vector<4x8x16xf32>, vector<4x16x16xf32>, vector<4x8x16xf32> -> vector<4x8x16xf32>
    %24 = vector.shape_cast %23 : vector<4x8x16xf32> to vector<32x16xf32>
    %c0_17 = arith.constant 0 : index
    %c0_18 = arith.constant 0 : index
    %25 = vector.load %arg8[%c0_17, %c0_18] : memref<32x32xf32, #tpu.memory_space<vmem>>, vector<32x16xf32>
    tpu.vector_store %arg8[%c0_17, %c0_18], %24 {strides = array<i32>} : memref<32x32xf32, #tpu.memory_space<vmem>>, vector<32x16xf32>,
    %c0_19 = arith.constant 0 : index
    %c16 = arith.constant 16 : index
    %26 = vector.load %arg7[%c0_19, %c16] : memref<96x32xf32, #tpu.memory_space<vmem>>, vector<32x16xf32>
    %27 = vector.shape_cast %26 : vector<32x16xf32> to vector<4x8x16xf32>
    %c32_20 = arith.constant 32 : index
    %c16_21 = arith.constant 16 : index
    %28 = vector.load %arg7[%c32_20, %c16_21] : memref<96x32xf32, #tpu.memory_space<vmem>>, vector<32x16xf32>
    %29 = vector.shape_cast %28 : vector<32x16xf32> to vector<4x8x16xf32>
    %c64_22 = arith.constant 64 : index
    %c16_23 = arith.constant 16 : index
    %30 = vector.load %arg7[%c64_22, %c16_23] : memref<96x32xf32, #tpu.memory_space<vmem>>, vector<32x16xf32>
    %31 = vector.shape_cast %30 : vector<32x16xf32> to vector<4x8x16xf32>
    %cst_24 = arith.constant dense<0.000000e+00> : vector<4x16x16xf32>
    %32 = tpu.matmul %27, %29, %cst_24 {dimension_numbers = #tpu.dot_dimension_numbers<[1], [1], [2], [2], [0, 0, 0, 2, 1, 2], [0], [0]>} : vector<4x8x16xf32>, vector<4x8x16xf32>, vector<4x16x16xf32> -> vector<4x16x16xf32>
    %cst_25 = arith.constant dense<0xFF800000> : vector<4x16xf32>
    %33 = vector.multi_reduction <maximumf>, %32, %cst_25 [2] : vector<4x16x16xf32> to vector<4x16xf32>
    %34 = vector.shape_cast %33 : vector<4x16xf32> to vector<4x16x1xf32>
    %35 = vector.broadcast %34 : vector<4x16x1xf32> to vector<4x16x16xf32>
    %36 = arith.subf %32, %35 : vector<4x16x16xf32>
    %37 = math.exp %36 : vector<4x16x16xf32>
    %cst_26 = arith.constant dense<0.000000e+00> : vector<4x16xf32>
    %38 = vector.multi_reduction <add>, %37, %cst_26 [2] : vector<4x16x16xf32> to vector<4x16xf32>
    %39 = vector.shape_cast %38 : vector<4x16xf32> to vector<4x16x1xf32>
    %40 = vector.broadcast %39 : vector<4x16x1xf32> to vector<4x16x16xf32>
    %41 = arith.divf %37, %40 : vector<4x16x16xf32>
    %c1 = arith.constant 1 : index
    %c0_27 = arith.constant 0 : index
    %c0_28 = arith.constant 0 : index
    %c0_29 = arith.constant 0 : index
    %42 = vector.load %arg6[%c1, %c0_27, %c0_28, %c0_29] : memref<2x4x16x16xf32, #tpu.memory_space<vmem>>, vector<1x4x16x16xf32>
    %43 = vector.shape_cast %42 : vector<1x4x16x16xf32> to vector<4x16x16xf32>
    %44 = vector.shape_cast %41 : vector<4x16x16xf32> to vector<1x4x16x16xf32>
    tpu.vector_store %arg6[%c1, %c0_27, %c0_28, %c0_29], %44 {strides = array<i32>} : memref<2x4x16x16xf32, #tpu.memory_space<vmem>>, vector<1x4x16x16xf32>,
    %cst_30 = arith.constant dense<0.000000e+00> : vector<4x8x16xf32>
    %45 = tpu.matmul %31, %41, %cst_30 {dimension_numbers = #tpu.dot_dimension_numbers<[2], [2], [1], [1], [0, 0, 0, 1, 1, 1], [0], [0]>} : vector<4x8x16xf32>, vector<4x16x16xf32>, vector<4x8x16xf32> -> vector<4x8x16xf32>
    %46 = vector.shape_cast %45 : vector<4x8x16xf32> to vector<32x16xf32>
    %c0_31 = arith.constant 0 : index
    %c16_32 = arith.constant 16 : index
    %47 = vector.load %arg8[%c0_31, %c16_32] : memref<32x32xf32, #tpu.memory_space<vmem>>, vector<32x16xf32>
    tpu.vector_store %arg8[%c0_31, %c16_32], %46 {strides = array<i32>} : memref<32x32xf32, #tpu.memory_space<vmem>>, vector<32x16xf32>,
    %c0_33 = arith.constant 0 : index
    %c0_34 = arith.constant 0 : index
    %48 = vector.load %arg8[%c0_33, %c0_34] : memref<32x32xf32, #tpu.memory_space<vmem>>, vector<32x32xf32>
    %c0_35 = arith.constant 0 : index
    %c0_36 = arith.constant 0 : index
    %49 = vector.load %arg3[%c0_35, %c0_36] : memref<32x32xf32, #tpu.memory_space<vmem>>, vector<32x32xf32>
    %cst_37 = arith.constant dense<0.000000e+00> : vector<32x32xf32>
    %50 = tpu.matmul %49, %48, %cst_37 {dimension_numbers = #tpu.dot_dimension_numbers<[1], [0], [0], [1], [0, 0, 1, 1], [], []>} : vector<32x32xf32>, vector<32x32xf32>, vector<32x32xf32> -> vector<32x32xf32>
    %c0_38 = arith.constant 0 : index
    %c0_39 = arith.constant 0 : index
    %51 = vector.load %arg4[%c0_38, %c0_39] : memref<32x1xf32, #tpu.memory_space<vmem>>, vector<32x1xf32>
    %52 = vector.broadcast %51 : vector<32x1xf32> to vector<32x32xf32>
    %53 = arith.addf %50, %52 : vector<32x32xf32>
    %c0_40 = arith.constant 0 : index
    %c0_41 = arith.constant 0 : index
    %54 = vector.load %arg5[%c0_40, %c0_41] : memref<32x32xf32, #tpu.memory_space<vmem>>, vector<32x32xf32>
    tpu.vector_store %arg5[%c0_40, %c0_41], %53 {strides = array<i32>} : memref<32x32xf32, #tpu.memory_space<vmem>>, vector<32x32xf32>,
    return
  }
  func.func @transform_0(%arg0: i32) -> (i32, i32) {
    %c0_i32 = arith.constant 0 : i32
    %c0_i32_0 = arith.constant 0 : i32
    return %c0_i32, %arg0 : i32, i32
  }
  func.func @transform_1(%arg0: i32) -> (i32, i32) {
    %c0_i32 = arith.constant 0 : i32
    %c0_i32_0 = arith.constant 0 : i32
    %c0_i32_1 = arith.constant 0 : i32
    return %c0_i32, %c0_i32_0 : i32, i32
  }
  func.func @transform_2(%arg0: i32) -> (i32, i32) {
    %c0_i32 = arith.constant 0 : i32
    %c0_i32_0 = arith.constant 0 : i32
    %c0_i32_1 = arith.constant 0 : i32
    return %c0_i32, %c0_i32_0 : i32, i32
  }
  func.func @transform_3(%arg0: i32) -> (i32, i32) {
    %c0_i32 = arith.constant 0 : i32
    %c0_i32_0 = arith.constant 0 : i32
    %c0_i32_1 = arith.constant 0 : i32
    return %c0_i32, %c0_i32_0 : i32, i32
  }
  func.func @transform_4(%arg0: i32) -> (i32, i32) {
    %c0_i32 = arith.constant 0 : i32
    %c0_i32_0 = arith.constant 0 : i32
    return %c0_i32, %arg0 : i32, i32
  }
  func.func @transform_5(%arg0: i32) -> (i32, i32, i32, i32) {
    %c0_i32 = arith.constant 0 : i32
    %c0_i32_0 = arith.constant 0 : i32
    %c0_i32_1 = arith.constant 0 : i32
    %c0_i32_2 = arith.constant 0 : i32
    return %arg0, %c0_i32, %c0_i32_0, %c0_i32_1 : i32, i32, i32, i32
  }
}

</mosaic_0001>

<llo_original>
// kernel: tpu_custom_call.1
$region0: #{tpu_custom_call.1}
  #allocation0 [shape = 'u32[]', space=smem, size = 0x4, offset = 0x4, fixed_abs, tag = 'smem constant byte address 0x4 - core index']
  #allocation1 [shape = 'u32[144,128]{1,0:T(1,128)}', space=vmem, size = 0x12000, scoped, tag = 'internal scratch']
  #allocation2 [shape = 'f32[96,32]{1,0:T(8,128)}', space=vmem, size = 0xc000, scoped, tag = 'scratch operand']
  #allocation3 [shape = 'f32[32,32]{1,0:T(8,128)}', space=vmem, size = 0x4000, scoped, tag = 'scratch operand']
  %s0 = inlined_call_operand.vmem [shape: f32[32,32], index: 0, kind: input, shape index: {}]
  %s1 = inlined_call_operand.vmem [shape: f32[96,32], index: 1, kind: input, shape index: {}]
  %s2 = inlined_call_operand.vmem [shape: f32[32,32], index: 2, kind: input, shape index: {}]
  %s3 = inlined_call_operand.vmem [shape: f32[32,1], index: 3, kind: input, shape index: {}]
  %s4 = inlined_call_operand.hbm [shape: f32[32,32], index: 4, kind: output, shape index: {0}]
  %s5 = inlined_call_operand.hbm [shape: f32[2,4,16,16], index: 5, kind: output, shape index: {1}]
  %6 = xla_tuple %s4, %s5
  %s7 = sld [smem:[#allocation0]]
  $region34: #{tpu_custom_call.1} parent=0
    _
  %s9 = ssub.s32 1, %s7
  %s10 = scalar_select 0, %s9, %s7
  $region1: #{tpu_custom_call.1} parent=0
    #allocation4 [shape = 'u8[16384]{0}', space=vmem, size = 0x4000, scoped, tag = 'output window, operand 0, single buffered']
    #allocation5 [shape = 's32[1]{0}', space=sflag, size = 0x4, scoped, tag = 'scoped memory for tpu_custom_call.1']
    #allocation6 [shape = 'u8[65536]{0}', space=vmem, size = 0x10000, scoped, tag = 'output window, operand 1, single buffered']
    #allocation7 [shape = 's32[1]{0}', space=sflag, size = 0x4, scoped, tag = 'scoped memory for tpu_custom_call.1']
    %11 = vsyncpa [#allocation5], 0
    %12 = vsyncpa [#allocation7], 0
    // Predicated region
    $region2: #{tpu_custom_call.1} parent=1 // pred_check
      _
    $region3: #{tpu_custom_call.1} parent=1 // pred_check_branch
      %14 = sbr.rel (0) target = $region5
    $region4: #{tpu_custom_call.1} parent=1 // pred_region
      _
    $region5: #{tpu_custom_call.1} parent=1 // pred_fallthru
      _
    // Predicated region
    $region6: #{tpu_custom_call.1} parent=1 // pred_check
      _
    $region7: #{tpu_custom_call.1} parent=1 // pred_check_branch
      %16 = sbr.rel (0) target = $region9
    $region8: #{tpu_custom_call.1} parent=1 // pred_region
      _
    $region9: #{tpu_custom_call.1} parent=1 // pred_fallthru
      _
    // Predicated region
    $region10: #{tpu_custom_call.1} parent=1 // pred_check
      _
    $region11: #{tpu_custom_call.1} parent=1 // pred_check_branch
      %18 = sbr.rel (0) target = $region13
    $region12: #{tpu_custom_call.1} parent=1 // pred_region
      _
    $region13: #{tpu_custom_call.1} parent=1 // pred_fallthru
      _
    // Predicated region
    $region14: #{tpu_custom_call.1} parent=1 // pred_check
      _
    $region15: #{tpu_custom_call.1} parent=1 // pred_check_branch
      %20 = sbr.rel (0) target = $region17
    $region16: #{tpu_custom_call.1} parent=1 // pred_region
      _
    $region17: #{tpu_custom_call.1} parent=1 // pred_fallthru
      _
    %v21 = vld [vmem:[%s1] sm:$0xff]
    %v22 = vld [vmem:[%s1 + $0x8] sm:$0xff]
    %v23 = vld [vmem:[%s1 + $0x10] sm:$0xff]
    %v24 = vld [vmem:[%s1 + $0x18] sm:$0xff]
    %v25 = vld [vmem:[%s1 + $0x20] sm:$0xff]
    %v26 = vld [vmem:[%s1 + $0x28] sm:$0xff]
    %v27 = vld [vmem:[%s1 + $0x30] sm:$0xff]
    %v28 = vld [vmem:[%s1 + $0x38] sm:$0xff]
    %v29 = vld [vmem:[%s1 + $0x40] sm:$0xff]
    %v30 = vld [vmem:[%s1 + $0x48] sm:$0xff]
    %v31 = vld [vmem:[%s1 + $0x50] sm:$0xff]
    %v32 = vld [vmem:[%s1 + $0x58] sm:$0xff]
    %v33 = vld [vmem:[%s0] sm:$0xff]
    %v34 = vld [vmem:[%s0 + $0x8] sm:$0xff]
    %v35 = vld [vmem:[%s0 + $0x10] sm:$0xff]
    %v36 = vld [vmem:[%s0 + $0x18] sm:$0xff]
    %vm37 = vcmask 261120
    %v39 = vsel %vm37, %v21, 0
    %v42 = vsel %vm37, %v22, 0
    %v45 = vsel %vm37, %v23, 0
    %v48 = vsel %vm37, %v24, 0
    %v51 = vsel %vm37, %v25, 0
    %v54 = vsel %vm37, %v26, 0
    %v57 = vsel %vm37, %v27, 0
    %v60 = vsel %vm37, %v28, 0
    %v63 = vsel %vm37, %v29, 0
    %v66 = vsel %vm37, %v30, 0
    %v69 = vsel %vm37, %v31, 0
    %v72 = vsel %vm37, %v32, 0
    %74 = vmatprep.subr.mxu0 0.0
    %75 = vmatpush1.msra.mxu0 %v33
    %76 = vmatprep.subr.mxu0 0.0
    %77 = vmatpush1.msra.mxu0 %v34
    %78 = vmatprep.subr.mxu0 0.0
    %79 = vmatpush1.msra.mxu0 %v35
    %80 = vmatprep.subr.mxu0 0.0
    %81 = vmatpush1.msra.mxu0 %v36
    %82 = vmatprep.subr.mxu0 0.0
    %83 = vmatpush1.msra.mxu0 0.0
    %84 = vmatprep.subr.mxu0 0.0
    %85 = vmatpush1.msra.mxu0 0.0
    %86 = vmatprep.subr.mxu0 0.0
    %87 = vmatpush1.msra.mxu0 0.0
    %88 = vmatprep.subr.mxu0 0.0
    %89 = vmatpush1.msra.mxu0 0.0
    %90 = vmatprep.subr.mxu0 0.0
    %91 = vmatpush1.msra.mxu0 0.0
    %92 = vmatprep.subr.mxu0 0.0
    %93 = vmatpush1.msra.mxu0 0.0
    %94 = vmatprep.subr.mxu0 0.0
    %95 = vmatpush1.msra.mxu0 0.0
    %96 = vmatprep.subr.mxu0 0.0
    %97 = vmatpush1.msra.mxu0 0.0
    %98 = vmatprep.subr.mxu0 0.0
    %99 = vmatpush1.msra.mxu0 0.0
    %100 = vmatprep.subr.mxu0 0.0
    %101 = vmatpush1.msra.mxu0 0.0
    %102 = vmatprep.subr.mxu0 0.0
    %103 = vmatpush1.msra.mxu0 0.0
    %104 = vmatprep.subr.mxu0 0.0
    %105 = vmatpush1.msra.mxu0 0.0
    %106 = vmatprep.subr.mxu0 0.0
    %107 = vmatpush1.msra.mxu0 0.0
    %108 = vmatprep.subr.mxu0 0.0
    %109 = vmatpush1.msra.mxu0 0.0
    %110 = vmatprep.subr.mxu0 0.0
    %111 = vmatpush1.msra.mxu0 0.0
    %112 = vmatprep.subr.mxu0 0.0
    %113 = vmatpush1.msra.mxu0 0.0
    %114 = vmatprep.subr.mxu0 0.0
    %115 = vmatpush1.msra.mxu0 0.0
    %116 = vmatprep.subr.mxu0 0.0
    %117 = vmatpush1.msra.mxu0 0.0
    %118 = vmatprep.subr.mxu0 0.0
    %119 = vmatpush1.msra.mxu0 0.0
    %120 = vmatprep.subr.mxu0 0.0
    %121 = vmatpush1.msra.mxu0 0.0
    %122 = vmatprep.subr.mxu0 0.0
    %123 = vmatpush1.msra.mxu0 0.0
    %124 = vmatprep.subr.mxu0 0.0
    %125 = vmatpush1.msra.mxu0 0.0
    %126 = vmatprep.subr.mxu0 0.0
    %127 = vmatpush1.msra.mxu0 0.0
    %128 = vmatprep.subr.mxu0 0.0
    %129 = vmatpush1.msra.mxu0 0.0
    %130 = vmatprep.subr.mxu0 0.0
    %131 = vmatpush1.msra.mxu0 0.0
    %132 = vmatprep.subr.mxu0 0.0
    %133 = vmatpush1.msra.mxu0 0.0
    %134 = vmatprep.subr.mxu0 0.0
    %135 = vmatpush1.msra.mxu0 0.0
    %136 = vmatprep.subr.mxu0 0.0
    %137 = vmatpush1.msra.mxu0 0.0
    %138 = vmatprep.mubr.f32.mxu0 0.0
    %139 = vmatmul.mubr.f32.gmra.mrb[0].mxu0 %v39
    %v140 = vpop.f32.mrb[0].mxu0
    %v141 = vadd.f32 0.0, %v140
    %v142 = vpop.f32.mrb[0].mxu0
    %143 = vmatprep.mubr.f32.mxu0 0.0
    %144 = vmatmul.mubr.f32.gmra.mrb[0].mxu0 %v42
    %v145 = vpop.f32.mrb[0].mxu0
    %v146 = vadd.f32 0.0, %v145
    %v147 = vpop.f32.mrb[0].mxu0
    %148 = vmatprep.mubr.f32.mxu0 0.0
    %149 = vmatmul.mubr.f32.gmra.mrb[0].mxu0 %v45
    %v150 = vpop.f32.mrb[0].mxu0
    %v151 = vadd.f32 0.0, %v150
    %v152 = vpop.f32.mrb[0].mxu0
    %153 = vmatprep.mubr.f32.mxu0 0.0
    %154 = vmatmul.mubr.f32.gmra.mrb[0].mxu0 %v48
    %v155 = vpop.f32.mrb[0].mxu0
    %v156 = vadd.f32 0.0, %v155
    %v157 = vpop.f32.mrb[0].mxu0
    %158 = vmatprep.mubr.f32.mxu0 0.0
    %159 = vmatmul.mubr.f32.gmra.mrb[0].mxu0 %v51
    %v160 = vpop.f32.mrb[0].mxu0
    %v161 = vadd.f32 0.0, %v160
    %v162 = vpop.f32.mrb[0].mxu0
    %163 = vmatprep.mubr.f32.mxu0 0.0
    %164 = vmatmul.mubr.f32.gmra.mrb[0].mxu0 %v54
    %v165 = vpop.f32.mrb[0].mxu0
    %v166 = vadd.f32 0.0, %v165
    %v167 = vpop.f32.mrb[0].mxu0
    %168 = vmatprep.mubr.f32.mxu0 0.0
    %169 = vmatmul.mubr.f32.gmra.mrb[0].mxu0 %v57
    %v170 = vpop.f32.mrb[0].mxu0
    %v171 = vadd.f32 0.0, %v170
    %v172 = vpop.f32.mrb[0].mxu0
    %173 = vmatprep.mubr.f32.mxu0 0.0
    %174 = vmatmul.mubr.f32.gmra.mrb[0].mxu0 %v60
    %v175 = vpop.f32.mrb[0].mxu0
    %v176 = vadd.f32 0.0, %v175
    %v177 = vpop.f32.mrb[0].mxu0
    %178 = vmatprep.mubr.f32.mxu0 0.0
    %179 = vmatmul.mubr.f32.gmra.mrb[0].mxu0 %v63
    %v180 = vpop.f32.mrb[0].mxu0
    %v181 = vadd.f32 0.0, %v180
    %v182 = vpop.f32.mrb[0].mxu0
    %183 = vmatprep.mubr.f32.mxu0 0.0
    %184 = vmatmul.mubr.f32.gmra.mrb[0].mxu0 %v66
    %v185 = vpop.f32.mrb[0].mxu0
    %v186 = vadd.f32 0.0, %v185
    %v187 = vpop.f32.mrb[0].mxu0
    %188 = vmatprep.mubr.f32.mxu0 0.0
    %189 = vmatmul.mubr.f32.gmra.mrb[0].mxu0 %v69
    %v190 = vpop.f32.mrb[0].mxu0
    %v191 = vadd.f32 0.0, %v190
    %v192 = vpop.f32.mrb[0].mxu0
    %193 = vmatprep.mubr.f32.mxu0 0.0
    %194 = vmatmul.mubr.f32.gmra.mrb[0].mxu0 %v72
    %v195 = vpop.f32.mrb[0].mxu0
    %v196 = vadd.f32 0.0, %v195
    %v197 = vpop.f32.mrb[0].mxu0
    %198 = vdwg.mxu0
    %199 = vst.msk [vmem:[#allocation2] sm:$0xff] %vm37, %v141
    %200 = vst.msk [vmem:[#allocation2 + $0x8] sm:$0xff] %vm37, %v146
    %201 = vst.msk [vmem:[#allocation2 + $0x10] sm:$0xff] %vm37, %v151
    %202 = vst.msk [vmem:[#allocation2 + $0x18] sm:$0xff] %vm37, %v156
    %203 = vst.msk [vmem:[#allocation2 + $0x20] sm:$0xff] %vm37, %v161
    %204 = vst.msk [vmem:[#allocation2 + $0x28] sm:$0xff] %vm37, %v166
    %205 = vst.msk [vmem:[#allocation2 + $0x30] sm:$0xff] %vm37, %v171
    %206 = vst.msk [vmem:[#allocation2 + $0x38] sm:$0xff] %vm37, %v176
    %207 = vst.msk [vmem:[#allocation2 + $0x40] sm:$0xff] %vm37, %v181
    %208 = vst.msk [vmem:[#allocation2 + $0x48] sm:$0xff] %vm37, %v186
    %209 = vst.msk [vmem:[#allocation2 + $0x50] sm:$0xff] %vm37, %v191
    %210 = vst.msk [vmem:[#allocation2 + $0x58] sm:$0xff] %vm37, %v196
    %v211 = vld [vmem:[#allocation2] sm:$0xff]
    %v212 = vld [vmem:[#allocation2 + $0x8] sm:$0xff]
    %v213 = vld [vmem:[#allocation2 + $0x10] sm:$0xff]
    %v214 = vld [vmem:[#allocation2 + $0x18] sm:$0xff]
    %v215 = vld [vmem:[#allocation2 + $0x20] sm:$0xff]
    %v216 = vld [vmem:[#allocation2 + $0x28] sm:$0xff]
    %v217 = vld [vmem:[#allocation2 + $0x30] sm:$0xff]
    %v218 = vld [vmem:[#allocation2 + $0x38] sm:$0xff]
    %v219 = vld [vmem:[#allocation2 + $0x40] sm:$0xff]
    %v220 = vld [vmem:[#allocation2 + $0x48] sm:$0xff]
    %v221 = vld [vmem:[#allocation2 + $0x50] sm:$0xff]
    %v222 = vld [vmem:[#allocation2 + $0x58] sm:$0xff]
    %223 = vxpose.xlu0.b32.start [1/16] %v211, 128
    %224 = vxpose.xlu0.b32.cont [2/16] 0.0, 128
    %225 = vxpose.xlu0.b32.cont [3/16] 0.0, 128
    %226 = vxpose.xlu0.b32.cont [4/16] 0.0, 128
    %227 = vxpose.xlu0.b32.cont [5/16] 0.0, 128
    %228 = vxpose.xlu0.b32.cont [6/16] 0.0, 128
    %229 = vxpose.xlu0.b32.cont [7/16] 0.0, 128
    %230 = vxpose.xlu0.b32.cont [8/16] 0.0, 128
    %231 = vxpose.xlu0.b32.cont [9/16] 0.0, 128
    %232 = vxpose.xlu0.b32.cont [10/16] 0.0, 128
    %233 = vxpose.xlu0.b32.cont [11/16] 0.0, 128
    %234 = vxpose.xlu0.b32.cont [12/16] 0.0, 128
    %235 = vxpose.xlu0.b32.cont [13/16] 0.0, 128
    %236 = vxpose.xlu0.b32.cont [14/16] 0.0, 128
    %237 = vxpose.xlu0.b32.cont [15/16] 0.0, 128
    %238 = vxpose.xlu0.b32.end [16/16] 0.0, 128
    %v239 = vpop.trf.xlu0
    %v240 = vpop.trf.xlu0
    %v241 = vpop.trf.xlu0
    %v242 = vpop.trf.xlu0
    %v243 = vpop.trf.xlu0
    %v244 = vpop.trf.xlu0
    %v245 = vpop.trf.xlu0
    %v246 = vpop.trf.xlu0
    %v247 = vpop.trf.xlu0
    %v248 = vpop.trf.xlu0
    %v249 = vpop.trf.xlu0
    %v250 = vpop.trf.xlu0
    %v251 = vpop.trf.xlu0
    %v252 = vpop.trf.xlu0
    %v253 = vpop.trf.xlu0
    %v254 = vpop.trf.xlu0
    %vm255 = vcmask 64512
    %v257 = vsel %vm255, %v239, 0
    %v260 = vsel %vm255, %v240, 0
    %262 = vmatprep.subr.mxu0 0.0
    %263 = vmatpush1.msra.mxu0 %v215
    %264 = vmatprep.subr.mxu0 0.0
    %265 = vmatpush1.msra.mxu0 0.0
    %266 = vmatprep.subr.mxu0 0.0
    %267 = vmatpush1.msra.mxu0 0.0
    %268 = vmatprep.subr.mxu0 0.0
    %269 = vmatpush1.msra.mxu0 0.0
    %270 = vmatprep.subr.mxu0 0.0
    %271 = vmatpush1.msra.mxu0 0.0
    %272 = vmatprep.subr.mxu0 0.0
    %273 = vmatpush1.msra.mxu0 0.0
    %274 = vmatprep.subr.mxu0 0.0
    %275 = vmatpush1.msra.mxu0 0.0
    %276 = vmatprep.subr.mxu0 0.0
    %277 = vmatpush1.msra.mxu0 0.0
    %278 = vmatprep.subr.mxu0 0.0
    %279 = vmatpush1.msra.mxu0 0.0
    %280 = vmatprep.subr.mxu0 0.0
    %281 = vmatpush1.msra.mxu0 0.0
    %282 = vmatprep.subr.mxu0 0.0
    %283 = vmatpush1.msra.mxu0 0.0
    %284 = vmatprep.subr.mxu0 0.0
    %285 = vmatpush1.msra.mxu0 0.0
    %286 = vmatprep.subr.mxu0 0.0
    %287 = vmatpush1.msra.mxu0 0.0
    %288 = vmatprep.subr.mxu0 0.0
    %289 = vmatpush1.msra.mxu0 0.0
    %290 = vmatprep.subr.mxu0 0.0
    %291 = vmatpush1.msra.mxu0 0.0
    %292 = vmatprep.subr.mxu0 0.0
    %293 = vmatpush1.msra.mxu0 0.0
    %294 = vmatprep.subr.mxu0 0.0
    %295 = vmatpush1.msra.mxu0 0.0
    %296 = vmatprep.subr.mxu0 0.0
    %297 = vmatpush1.msra.mxu0 0.0
    %298 = vmatprep.subr.mxu0 0.0
    %299 = vmatpush1.msra.mxu0 0.0
    %300 = vmatprep.subr.mxu0 0.0
    %301 = vmatpush1.msra.mxu0 0.0
    %302 = vmatprep.subr.mxu0 0.0
    %303 = vmatpush1.msra.mxu0 0.0
    %304 = vmatprep.subr.mxu0 0.0
    %305 = vmatpush1.msra.mxu0 0.0
    %306 = vmatprep.subr.mxu0 0.0
    %307 = vmatpush1.msra.mxu0 0.0
    %308 = vmatprep.subr.mxu0 0.0
    %309 = vmatpush1.msra.mxu0 0.0
    %310 = vmatprep.subr.mxu0 0.0
    %311 = vmatpush1.msra.mxu0 0.0
    %312 = vmatprep.subr.mxu0 0.0
    %313 = vmatpush1.msra.mxu0 0.0
    %314 = vmatprep.subr.mxu0 0.0
    %315 = vmatpush1.msra.mxu0 0.0
    %316 = vmatprep.subr.mxu0 0.0
    %317 = vmatpush1.msra.mxu0 0.0
    %318 = vmatprep.subr.mxu0 0.0
    %319 = vmatpush1.msra.mxu0 0.0
    %320 = vmatprep.subr.mxu0 0.0
    %321 = vmatpush1.msra.mxu0 0.0
    %322 = vmatprep.subr.mxu0 0.0
    %323 = vmatpush1.msra.mxu0 0.0
    %324 = vmatprep.subr.mxu0 0.0
    %325 = vmatpush1.msra.mxu0 0.0
    %326 = vmatprep.mubr.f32.mxu0 0.0
    %327 = vmatmul.mubr.f32.gmra.mrb[0].mxu0 %v257
    %v328 = vpop.f32.mrb[0].mxu0
    %v329 = vadd.f32 0.0, %v328
    %v330 = vpop.f32.mrb[0].mxu0
    %331 = vmatprep.mubr.f32.mxu0 0.0
    %332 = vmatmul.mubr.f32.gmra.mrb[0].mxu0 %v260
    %v333 = vpop.f32.mrb[0].mxu0
    %v334 = vadd.f32 0.0, %v333
    %v335 = vpop.f32.mrb[0].mxu0
    %336 = vdwg.mxu0
    %337 = vxpose.xlu0.b32.start [1/16] %v212, 128
    %338 = vxpose.xlu0.b32.cont [2/16] 0.0, 128
    %339 = vxpose.xlu0.b32.cont [3/16] 0.0, 128
    %340 = vxpose.xlu0.b32.cont [4/16] 0.0, 128
    %341 = vxpose.xlu0.b32.cont [5/16] 0.0, 128
    %342 = vxpose.xlu0.b32.cont [6/16] 0.0, 128
    %343 = vxpose.xlu0.b32.cont [7/16] 0.0, 128
    %344 = vxpose.xlu0.b32.cont [8/16] 0.0, 128
    %345 = vxpose.xlu0.b32.cont [9/16] 0.0, 128
    %346 = vxpose.xlu0.b32.cont [10/16] 0.0, 128
    %347 = vxpose.xlu0.b32.cont [11/16] 0.0, 128
    %348 = vxpose.xlu0.b32.cont [12/16] 0.0, 128
    %349 = vxpose.xlu0.b32.cont [13/16] 0.0, 128
    %350 = vxpose.xlu0.b32.cont [14/16] 0.0, 128
    %351 = vxpose.xlu0.b32.cont [15/16] 0.0, 128
    %352 = vxpose.xlu0.b32.end [16/16] 0.0, 128
    %v353 = vpop.trf.xlu0
    %v354 = vpop.trf.xlu0
    %v355 = vpop.trf.xlu0
    %v356 = vpop.trf.xlu0
    %v357 = vpop.trf.xlu0
    %v358 = vpop.trf.xlu0
    %v359 = vpop.trf.xlu0
    %v360 = vpop.trf.xlu0
    %v361 = vpop.trf.xlu0
    %v362 = vpop.trf.xlu0
    %v363 = vpop.trf.xlu0
    %v364 = vpop.trf.xlu0
    %v365 = vpop.trf.xlu0
    %v366 = vpop.trf.xlu0
    %v367 = vpop.trf.xlu0
    %v368 = vpop.trf.xlu0
    %v370 = vsel %vm255, %v353, 0
    %v373 = vsel %vm255, %v354, 0
    %375 = vmatprep.subr.mxu0 0.0
    %376 = vmatpush1.msra.mxu0 %v216
    %377 = vmatprep.subr.mxu0 0.0
    %378 = vmatpush1.msra.mxu0 0.0
    %379 = vmatprep.subr.mxu0 0.0
    %380 = vmatpush1.msra.mxu0 0.0
    %381 = vmatprep.subr.mxu0 0.0
    %382 = vmatpush1.msra.mxu0 0.0
    %383 = vmatprep.subr.mxu0 0.0
    %384 = vmatpush1.msra.mxu0 0.0
    %385 = vmatprep.subr.mxu0 0.0
    %386 = vmatpush1.msra.mxu0 0.0
    %387 = vmatprep.subr.mxu0 0.0
    %388 = vmatpush1.msra.mxu0 0.0
    %389 = vmatprep.subr.mxu0 0.0
    %390 = vmatpush1.msra.mxu0 0.0
    %391 = vmatprep.subr.mxu0 0.0
    %392 = vmatpush1.msra.mxu0 0.0
    %393 = vmatprep.subr.mxu0 0.0
    %394 = vmatpush1.msra.mxu0 0.0
    %395 = vmatprep.subr.mxu0 0.0
    %396 = vmatpush1.msra.mxu0 0.0
    %397 = vmatprep.subr.mxu0 0.0
    %398 = vmatpush1.msra.mxu0 0.0
    %399 = vmatprep.subr.mxu0 0.0
    %400 = vmatpush1.msra.mxu0 0.0
    %401 = vmatprep.subr.mxu0 0.0
    %402 = vmatpush1.msra.mxu0 0.0
    %403 = vmatprep.subr.mxu0 0.0
    %404 = vmatpush1.msra.mxu0 0.0
    %405 = vmatprep.subr.mxu0 0.0
    %406 = vmatpush1.msra.mxu0 0.0
    %407 = vmatprep.subr.mxu0 0.0
    %408 = vmatpush1.msra.mxu0 0.0
    %409 = vmatprep.subr.mxu0 0.0
    %410 = vmatpush1.msra.mxu0 0.0
    %411 = vmatprep.subr.mxu0 0.0
    %412 = vmatpush1.msra.mxu0 0.0
    %413 = vmatprep.subr.mxu0 0.0
    %414 = vmatpush1.msra.mxu0 0.0
    %415 = vmatprep.subr.mxu0 0.0
    %416 = vmatpush1.msra.mxu0 0.0
    %417 = vmatprep.subr.mxu0 0.0
    %418 = vmatpush1.msra.mxu0 0.0
    %419 = vmatprep.subr.mxu0 0.0
    %420 = vmatpush1.msra.mxu0 0.0
    %421 = vmatprep.subr.mxu0 0.0
    %422 = vmatpush1.msra.mxu0 0.0
    %423 = vmatprep.subr.mxu0 0.0
    %424 = vmatpush1.msra.mxu0 0.0
    %425 = vmatprep.subr.mxu0 0.0
    %426 = vmatpush1.msra.mxu0 0.0
    %427 = vmatprep.subr.mxu0 0.0
    %428 = vmatpush1.msra.mxu0 0.0
    %429 = vmatprep.subr.mxu0 0.0
    %430 = vmatpush1.msra.mxu0 0.0
    %431 = vmatprep.subr.mxu0 0.0
    %432 = vmatpush1.msra.mxu0 0.0
    %433 = vmatprep.subr.mxu0 0.0
    %434 = vmatpush1.msra.mxu0 0.0
    %435 = vmatprep.subr.mxu0 0.0
    %436 = vmatpush1.msra.mxu0 0.0
    %437 = vmatprep.subr.mxu0 0.0
    %438 = vmatpush1.msra.mxu0 0.0
    %439 = vmatprep.mubr.f32.mxu0 0.0
    %440 = vmatmul.mubr.f32.gmra.mrb[0].mxu0 %v370
    %v441 = vpop.f32.mrb[0].mxu0
    %v442 = vadd.f32 0.0, %v441
    %v443 = vpop.f32.mrb[0].mxu0
    %444 = vmatprep.mubr.f32.mxu0 0.0
    %445 = vmatmul.mubr.f32.gmra.mrb[0].mxu0 %v373
    %v446 = vpop.f32.mrb[0].mxu0
    %v447 = vadd.f32 0.0, %v446
    %v448 = vpop.f32.mrb[0].mxu0
    %449 = vdwg.mxu0
    %450 = vxpose.xlu0.b32.start [1/16] %v213, 128
    %451 = vxpose.xlu0.b32.cont [2/16] 0.0, 128
    %452 = vxpose.xlu0.b32.cont [3/16] 0.0, 128
    %453 = vxpose.xlu0.b32.cont [4/16] 0.0, 128
    %454 = vxpose.xlu0.b32.cont [5/16] 0.0, 128
    %455 = vxpose.xlu0.b32.cont [6/16] 0.0, 128
    %456 = vxpose.xlu0.b32.cont [7/16] 0.0, 128
    %457 = vxpose.xlu0.b32.cont [8/16] 0.0, 128
    %458 = vxpose.xlu0.b32.cont [9/16] 0.0, 128
    %459 = vxpose.xlu0.b32.cont [10/16] 0.0, 128
    %460 = vxpose.xlu0.b32.cont [11/16] 0.0, 128
    %461 = vxpose.xlu0.b32.cont [12/16] 0.0, 128
    %462 = vxpose.xlu0.b32.cont [13/16] 0.0, 128
    %463 = vxpose.xlu0.b32.cont [14/16] 0.0, 128
    %464 = vxpose.xlu0.b32.cont [15/16] 0.0, 128
    %465 = vxpose.xlu0.b32.end [16/16] 0.0, 128
    %v466 = vpop.trf.xlu0
    %v467 = vpop.trf.xlu0
    %v468 = vpop.trf.xlu0
    %v469 = vpop.trf.xlu0
    %v470 = vpop.trf.xlu0
    %v471 = vpop.trf.xlu0
    %v472 = vpop.trf.xlu0
    %v473 = vpop.trf.xlu0
    %v474 = vpop.trf.xlu0
    %v475 = vpop.trf.xlu0
    %v476 = vpop.trf.xlu0
    %v477 = vpop.trf.xlu0
    %v478 = vpop.trf.xlu0
    %v479 = vpop.trf.xlu0
    %v480 = vpop.trf.xlu0
    %v481 = vpop.trf.xlu0
    %v483 = vsel %vm255, %v466, 0
    %v486 = vsel %vm255, %v467, 0
    %488 = vmatprep.subr.mxu0 0.0
    %489 = vmatpush1.msra.mxu0 %v217
    %490 = vmatprep.subr.mxu0 0.0
    %491 = vmatpush1.msra.mxu0 0.0
    %492 = vmatprep.subr.mxu0 0.0
    %493 = vmatpush1.msra.mxu0 0.0
    %494 = vmatprep.subr.mxu0 0.0
    %495 = vmatpush1.msra.mxu0 0.0
    %496 = vmatprep.subr.mxu0 0.0
    %497 = vmatpush1.msra.mxu0 0.0
    %498 = vmatprep.subr.mxu0 0.0
    %499 = vmatpush1.msra.mxu0 0.0
    %500 = vmatprep.subr.mxu0 0.0
    %501 = vmatpush1.msra.mxu0 0.0
    %502 = vmatprep.subr.mxu0 0.0
    %503 = vmatpush1.msra.mxu0 0.0
    %504 = vmatprep.subr.mxu0 0.0
    %505 = vmatpush1.msra.mxu0 0.0
    %506 = vmatprep.subr.mxu0 0.0
    %507 = vmatpush1.msra.mxu0 0.0
    %508 = vmatprep.subr.mxu0 0.0
    %509 = vmatpush1.msra.mxu0 0.0
    %510 = vmatprep.subr.mxu0 0.0
    %511 = vmatpush1.msra.mxu0 0.0
    %512 = vmatprep.subr.mxu0 0.0
    %513 = vmatpush1.msra.mxu0 0.0
    %514 = vmatprep.subr.mxu0 0.0
    %515 = vmatpush1.msra.mxu0 0.0
    %516 = vmatprep.subr.mxu0 0.0
    %517 = vmatpush1.msra.mxu0 0.0
    %518 = vmatprep.subr.mxu0 0.0
    %519 = vmatpush1.msra.mxu0 0.0
    %520 = vmatprep.subr.mxu0 0.0
    %521 = vmatpush1.msra.mxu0 0.0
    %522 = vmatprep.subr.mxu0 0.0
    %523 = vmatpush1.msra.mxu0 0.0
    %524 = vmatprep.subr.mxu0 0.0
    %525 = vmatpush1.msra.mxu0 0.0
    %526 = vmatprep.subr.mxu0 0.0
    %527 = vmatpush1.msra.mxu0 0.0
    %528 = vmatprep.subr.mxu0 0.0
    %529 = vmatpush1.msra.mxu0 0.0
    %530 = vmatprep.subr.mxu0 0.0
    %531 = vmatpush1.msra.mxu0 0.0
    %532 = vmatprep.subr.mxu0 0.0
    %533 = vmatpush1.msra.mxu0 0.0
    %534 = vmatprep.subr.mxu0 0.0
    %535 = vmatpush1.msra.mxu0 0.0
    %536 = vmatprep.subr.mxu0 0.0
    %537 = vmatpush1.msra.mxu0 0.0
    %538 = vmatprep.subr.mxu0 0.0
    %539 = vmatpush1.msra.mxu0 0.0
    %540 = vmatprep.subr.mxu0 0.0
    %541 = vmatpush1.msra.mxu0 0.0
    %542 = vmatprep.subr.mxu0 0.0
    %543 = vmatpush1.msra.mxu0 0.0
    %544 = vmatprep.subr.mxu0 0.0
    %545 = vmatpush1.msra.mxu0 0.0
    %546 = vmatprep.subr.mxu0 0.0
    %547 = vmatpush1.msra.mxu0 0.0
    %548 = vmatprep.subr.mxu0 0.0
    %549 = vmatpush1.msra.mxu0 0.0
    %550 = vmatprep.subr.mxu0 0.0
    %551 = vmatpush1.msra.mxu0 0.0
    %552 = vmatprep.mubr.f32.mxu0 0.0
    %553 = vmatmul.mubr.f32.gmra.mrb[0].mxu0 %v483
    %v554 = vpop.f32.mrb[0].mxu0
    %v555 = vadd.f32 0.0, %v554
    %v556 = vpop.f32.mrb[0].mxu0
    %557 = vmatprep.mubr.f32.mxu0 0.0
    %558 = vmatmul.mubr.f32.gmra.mrb[0].mxu0 %v486
    %v559 = vpop.f32.mrb[0].mxu0
    %v560 = vadd.f32 0.0, %v559
    %v561 = vpop.f32.mrb[0].mxu0
    %562 = vdwg.mxu0
    %563 = vxpose.xlu0.b32.start [1/16] %v214, 128
    %564 = vxpose.xlu0.b32.cont [2/16] 0.0, 128
    %565 = vxpose.xlu0.b32.cont [3/16] 0.0, 128
    %566 = vxpose.xlu0.b32.cont [4/16] 0.0, 128
    %567 = vxpose.xlu0.b32.cont [5/16] 0.0, 128
    %568 = vxpose.xlu0.b32.cont [6/16] 0.0, 128
    %569 = vxpose.xlu0.b32.cont [7/16] 0.0, 128
    %570 = vxpose.xlu0.b32.cont [8/16] 0.0, 128
    %571 = vxpose.xlu0.b32.cont [9/16] 0.0, 128
    %572 = vxpose.xlu0.b32.cont [10/16] 0.0, 128
    %573 = vxpose.xlu0.b32.cont [11/16] 0.0, 128
    %574 = vxpose.xlu0.b32.cont [12/16] 0.0, 128
    %575 = vxpose.xlu0.b32.cont [13/16] 0.0, 128
    %576 = vxpose.xlu0.b32.cont [14/16] 0.0, 128
    %577 = vxpose.xlu0.b32.cont [15/16] 0.0, 128
    %578 = vxpose.xlu0.b32.end [16/16] 0.0, 128
    %v579 = vpop.trf.xlu0
    %v580 = vpop.trf.xlu0
    %v581 = vpop.trf.xlu0
    %v582 = vpop.trf.xlu0
    %v583 = vpop.trf.xlu0
    %v584 = vpop.trf.xlu0
    %v585 = vpop.trf.xlu0
    %v586 = vpop.trf.xlu0
    %v587 = vpop.trf.xlu0
    %v588 = vpop.trf.xlu0
    %v589 = vpop.trf.xlu0
    %v590 = vpop.trf.xlu0
    %v591 = vpop.trf.xlu0
    %v592 = vpop.trf.xlu0
    %v593 = vpop.trf.xlu0
    %v594 = vpop.trf.xlu0
    %v596 = vsel %vm255, %v579, 0
    %v599 = vsel %vm255, %v580, 0
    %601 = vmatprep.subr.mxu0 0.0
    %602 = vmatpush1.msra.mxu0 %v218
    %603 = vmatprep.subr.mxu0 0.0
    %604 = vmatpush1.msra.mxu0 0.0
    %605 = vmatprep.subr.mxu0 0.0
    %606 = vmatpush1.msra.mxu0 0.0
    %607 = vmatprep.subr.mxu0 0.0
    %608 = vmatpush1.msra.mxu0 0.0
    %609 = vmatprep.subr.mxu0 0.0
    %610 = vmatpush1.msra.mxu0 0.0
    %611 = vmatprep.subr.mxu0 0.0
    %612 = vmatpush1.msra.mxu0 0.0
    %613 = vmatprep.subr.mxu0 0.0
    %614 = vmatpush1.msra.mxu0 0.0
    %615 = vmatprep.subr.mxu0 0.0
    %616 = vmatpush1.msra.mxu0 0.0
    %617 = vmatprep.subr.mxu0 0.0
    %618 = vmatpush1.msra.mxu0 0.0
    %619 = vmatprep.subr.mxu0 0.0
    %620 = vmatpush1.msra.mxu0 0.0
    %621 = vmatprep.subr.mxu0 0.0
    %622 = vmatpush1.msra.mxu0 0.0
    %623 = vmatprep.subr.mxu0 0.0
    %624 = vmatpush1.msra.mxu0 0.0
    %625 = vmatprep.subr.mxu0 0.0
    %626 = vmatpush1.msra.mxu0 0.0
    %627 = vmatprep.subr.mxu0 0.0
    %628 = vmatpush1.msra.mxu0 0.0
    %629 = vmatprep.subr.mxu0 0.0
    %630 = vmatpush1.msra.mxu0 0.0
    %631 = vmatprep.subr.mxu0 0.0
    %632 = vmatpush1.msra.mxu0 0.0
    %633 = vmatprep.subr.mxu0 0.0
    %634 = vmatpush1.msra.mxu0 0.0
    %635 = vmatprep.subr.mxu0 0.0
    %636 = vmatpush1.msra.mxu0 0.0
    %637 = vmatprep.subr.mxu0 0.0
    %638 = vmatpush1.msra.mxu0 0.0
    %639 = vmatprep.subr.mxu0 0.0
    %640 = vmatpush1.msra.mxu0 0.0
    %641 = vmatprep.subr.mxu0 0.0
    %642 = vmatpush1.msra.mxu0 0.0
    %643 = vmatprep.subr.mxu0 0.0
    %644 = vmatpush1.msra.mxu0 0.0
    %645 = vmatprep.subr.mxu0 0.0
    %646 = vmatpush1.msra.mxu0 0.0
    %647 = vmatprep.subr.mxu0 0.0
    %648 = vmatpush1.msra.mxu0 0.0
    %649 = vmatprep.subr.mxu0 0.0
    %650 = vmatpush1.msra.mxu0 0.0
    %651 = vmatprep.subr.mxu0 0.0
    %652 = vmatpush1.msra.mxu0 0.0
    %653 = vmatprep.subr.mxu0 0.0
    %654 = vmatpush1.msra.mxu0 0.0
    %655 = vmatprep.subr.mxu0 0.0
    %656 = vmatpush1.msra.mxu0 0.0
    %657 = vmatprep.subr.mxu0 0.0
    %658 = vmatpush1.msra.mxu0 0.0
    %659 = vmatprep.subr.mxu0 0.0
    %660 = vmatpush1.msra.mxu0 0.0
    %661 = vmatprep.subr.mxu0 0.0
    %662 = vmatpush1.msra.mxu0 0.0
    %663 = vmatprep.subr.mxu0 0.0
    %664 = vmatpush1.msra.mxu0 0.0
    %665 = vmatprep.mubr.f32.mxu0 0.0
    %666 = vmatmul.mubr.f32.gmra.mrb[0].mxu0 %v596
    %v667 = vpop.f32.mrb[0].mxu0
    %v668 = vadd.f32 0.0, %v667
    %v669 = vpop.f32.mrb[0].mxu0
    %670 = vmatprep.mubr.f32.mxu0 0.0
    %671 = vmatmul.mubr.f32.gmra.mrb[0].mxu0 %v599
    %v672 = vpop.f32.mrb[0].mxu0
    %v673 = vadd.f32 0.0, %v672
    %v674 = vpop.f32.mrb[0].mxu0
    %675 = vdwg.mxu0
    %vm676 = vcmask 130048
    %v677 = vsel %vm676, %v329, -inf
    %678 = vmax.xlane.f32.xlu0 %v677
    %v679 = vpop.xlane.xlu0 %678
    %v680 = vsel %vm676, %v334, -inf
    %681 = vmax.xlane.f32.xlu0 %v680
    %v682 = vpop.xlane.xlu0 %681
    %v683 = vsel %vm676, %v442, -inf
    %684 = vmax.xlane.f32.xlu0 %v683
    %v685 = vpop.xlane.xlu0 %684
    %v686 = vsel %vm676, %v447, -inf
    %687 = vmax.xlane.f32.xlu0 %v686
    %v688 = vpop.xlane.xlu0 %687
    %v689 = vsel %vm676, %v555, -inf
    %690 = vmax.xlane.f32.xlu0 %v689
    %v691 = vpop.xlane.xlu0 %690
    %v692 = vsel %vm676, %v560, -inf
    %693 = vmax.xlane.f32.xlu0 %v692
    %v694 = vpop.xlane.xlu0 %693
    %v695 = vsel %vm676, %v668, -inf
    %696 = vmax.xlane.f32.xlu0 %v695
    %v697 = vpop.xlane.xlu0 %696
    %v698 = vsel %vm676, %v673, -inf
    %699 = vmax.xlane.f32.xlu0 %v698
    %v700 = vpop.xlane.xlu0 %699
    %v701 = vsub.f32 %v329, %v679
    %v702 = vsub.f32 %v334, %v682
    %v703 = vsub.f32 %v442, %v685
    %v704 = vsub.f32 %v447, %v688
    %v705 = vsub.f32 %v555, %v691
    %v706 = vsub.f32 %v560, %v694
    %v707 = vsub.f32 %v668, %v697
    %v708 = vsub.f32 %v673, %v700
    %v709 = vmul.f32 %v701, 1.442695
    %v710 = vpow.pop %v709
    %v711 = vmul.f32 %v702, 1.442695
    %v712 = vpow.pop %v711
    %v713 = vmul.f32 %v703, 1.442695
    %v714 = vpow.pop %v713
    %v715 = vmul.f32 %v704, 1.442695
    %v716 = vpow.pop %v715
    %v717 = vmul.f32 %v705, 1.442695
    %v718 = vpow.pop %v717
    %v719 = vmul.f32 %v706, 1.442695
    %v720 = vpow.pop %v719
    %v721 = vmul.f32 %v707, 1.442695
    %v722 = vpow.pop %v721
    %v723 = vmul.f32 %v708, 1.442695
    %v724 = vpow.pop %v723
    %v725 = vsel %vm676, %v710, 0.0
    %726 = vadd.xlane.f32.xlu0 %v725
    %v727 = vpop.xlane.xlu0 %726
    %v728 = vsel %vm676, %v712, 0.0
    %729 = vadd.xlane.f32.xlu0 %v728
    %v730 = vpop.xlane.xlu0 %729
    %v731 = vsel %vm676, %v714, 0.0
    %732 = vadd.xlane.f32.xlu0 %v731
    %v733 = vpop.xlane.xlu0 %732
    %v734 = vsel %vm676, %v716, 0.0
    %735 = vadd.xlane.f32.xlu0 %v734
    %v736 = vpop.xlane.xlu0 %735
    %v737 = vsel %vm676, %v718, 0.0
    %738 = vadd.xlane.f32.xlu0 %v737
    %v739 = vpop.xlane.xlu0 %738
    %v740 = vsel %vm676, %v720, 0.0
    %741 = vadd.xlane.f32.xlu0 %v740
    %v742 = vpop.xlane.xlu0 %741
    %v743 = vsel %vm676, %v722, 0.0
    %744 = vadd.xlane.f32.xlu0 %v743
    %v745 = vpop.xlane.xlu0 %744
    %v746 = vsel %vm676, %v724, 0.0
    %747 = vadd.xlane.f32.xlu0 %v746
    %v748 = vpop.xlane.xlu0 %747
    %v749 = vrcp.pop %v727
    %v750 = vmul.f32 %v710, %v749
    %v751 = vrcp.pop %v730
    %v752 = vmul.f32 %v712, %v751
    %v753 = vrcp.pop %v733
    %v754 = vmul.f32 %v714, %v753
    %v755 = vrcp.pop %v736
    %v756 = vmul.f32 %v716, %v755
    %v757 = vrcp.pop %v739
    %v758 = vmul.f32 %v718, %v757
    %v759 = vrcp.pop %v742
    %v760 = vmul.f32 %v720, %v759
    %v761 = vrcp.pop %v745
    %v762 = vmul.f32 %v722, %v761
    %v763 = vrcp.pop %v748
    %v764 = vmul.f32 %v724, %v763
    %765 = vst.msk [vmem:[#allocation6] sm:$0xff] %vm676, %v750
    %766 = vst.msk [vmem:[#allocation6 + $0x8] sm:$0xff] %vm676, %v752
    %767 = vst.msk [vmem:[#allocation6 + $0x10] sm:$0xff] %vm676, %v754
    %768 = vst.msk [vmem:[#allocation6 + $0x18] sm:$0xff] %vm676, %v756
    %769 = vst.msk [vmem:[#allocation6 + $0x20] sm:$0xff] %vm676, %v758
    %770 = vst.msk [vmem:[#allocation6 + $0x28] sm:$0xff] %vm676, %v760
    %771 = vst.msk [vmem:[#allocation6 + $0x30] sm:$0xff] %vm676, %v762
    %772 = vst.msk [vmem:[#allocation6 + $0x38] sm:$0xff] %vm676, %v764
    %v774 = vsel %vm676, %v219, 0
    %v777 = vsel %vm676, %v750, 0
    %v780 = vsel %vm676, %v752, 0
    %782 = vmatprep.subr.mxu0 0.0
    %783 = vmatpush1.xpose.msra.mxu0 %v777
    %784 = vmatprep.subr.mxu0 0.0
    %785 = vmatpush1.xpose.msra.mxu0 %v780
    %786 = vmatprep.subr.mxu0 0.0
    %787 = vmatpush1.xpose.msra.mxu0 0.0
    %788 = vmatprep.subr.mxu0 0.0
    %789 = vmatpush1.xpose.msra.mxu0 0.0
    %790 = vmatprep.subr.mxu0 0.0
    %791 = vmatpush1.xpose.msra.mxu0 0.0
    %792 = vmatprep.subr.mxu0 0.0
    %793 = vmatpush1.xpose.msra.mxu0 0.0
    %794 = vmatprep.subr.mxu0 0.0
    %795 = vmatpush1.xpose.msra.mxu0 0.0
    %796 = vmatprep.subr.mxu0 0.0
    %797 = vmatpush1.xpose.msra.mxu0 0.0
    %798 = vmatprep.subr.mxu0 0.0
    %799 = vmatpush1.xpose.msra.mxu0 0.0
    %800 = vmatprep.subr.mxu0 0.0
    %801 = vmatpush1.xpose.msra.mxu0 0.0
    %802 = vmatprep.subr.mxu0 0.0
    %803 = vmatpush1.xpose.msra.mxu0 0.0
    %804 = vmatprep.subr.mxu0 0.0
    %805 = vmatpush1.xpose.msra.mxu0 0.0
    %806 = vmatprep.subr.mxu0 0.0
    %807 = vmatpush1.xpose.msra.mxu0 0.0
    %808 = vmatprep.subr.mxu0 0.0
    %809 = vmatpush1.xpose.msra.mxu0 0.0
    %810 = vmatprep.subr.mxu0 0.0
    %811 = vmatpush1.xpose.msra.mxu0 0.0
    %812 = vmatprep.subr.mxu0 0.0
    %813 = vmatpush1.xpose.msra.mxu0 0.0
    %814 = vmatprep.subr.mxu0 0.0
    %815 = vmatpush1.xpose.msra.mxu0 0.0
    %816 = vmatprep.subr.mxu0 0.0
    %817 = vmatpush1.xpose.msra.mxu0 0.0
    %818 = vmatprep.subr.mxu0 0.0
    %819 = vmatpush1.xpose.msra.mxu0 0.0
    %820 = vmatprep.subr.mxu0 0.0
    %821 = vmatpush1.xpose.msra.mxu0 0.0
    %822 = vmatprep.subr.mxu0 0.0
    %823 = vmatpush1.xpose.msra.mxu0 0.0
    %824 = vmatprep.subr.mxu0 0.0
    %825 = vmatpush1.xpose.msra.mxu0 0.0
    %826 = vmatprep.subr.mxu0 0.0
    %827 = vmatpush1.xpose.msra.mxu0 0.0
    %828 = vmatprep.subr.mxu0 0.0
    %829 = vmatpush1.xpose.msra.mxu0 0.0
    %830 = vmatprep.subr.mxu0 0.0
    %831 = vmatpush1.xpose.msra.mxu0 0.0
    %832 = vmatprep.subr.mxu0 0.0
    %833 = vmatpush1.xpose.msra.mxu0 0.0
    %834 = vmatprep.subr.mxu0 0.0
    %835 = vmatpush1.xpose.msra.mxu0 0.0
    %836 = vmatprep.subr.mxu0 0.0
    %837 = vmatpush1.xpose.msra.mxu0 0.0
    %838 = vmatprep.subr.mxu0 0.0
    %839 = vmatpush1.xpose.msra.mxu0 0.0
    %840 = vmatprep.subr.mxu0 0.0
    %841 = vmatpush1.xpose.msra.mxu0 0.0
    %842 = vmatprep.subr.mxu0 0.0
    %843 = vmatpush1.xpose.msra.mxu0 0.0
    %844 = vmatprep.subr.mxu0 0.0
    %845 = vmatpush1.xpose.msra.mxu0 0.0
    %846 = vmatprep.mubr.f32.mxu0 0.0
    %847 = vmatmul.mubr.f32.gmra.mrb[0].mxu0 %v774
    %v848 = vpop.f32.mrb[0].mxu0
    %v849 = vadd.f32 0.0, %v848
    %v850 = vpop.f32.mrb[0].mxu0
    %851 = vdwg.mxu0
    %v853 = vsel %vm676, %v220, 0
    %v856 = vsel %vm676, %v754, 0
    %v859 = vsel %vm676, %v756, 0
    %861 = vmatprep.subr.mxu0 0.0
    %862 = vmatpush1.xpose.msra.mxu0 %v856
    %863 = vmatprep.subr.mxu0 0.0
    %864 = vmatpush1.xpose.msra.mxu0 %v859
    %865 = vmatprep.subr.mxu0 0.0
    %866 = vmatpush1.xpose.msra.mxu0 0.0
    %867 = vmatprep.subr.mxu0 0.0
    %868 = vmatpush1.xpose.msra.mxu0 0.0
    %869 = vmatprep.subr.mxu0 0.0
    %870 = vmatpush1.xpose.msra.mxu0 0.0
    %871 = vmatprep.subr.mxu0 0.0
    %872 = vmatpush1.xpose.msra.mxu0 0.0
    %873 = vmatprep.subr.mxu0 0.0
    %874 = vmatpush1.xpose.msra.mxu0 0.0
    %875 = vmatprep.subr.mxu0 0.0
    %876 = vmatpush1.xpose.msra.mxu0 0.0
    %877 = vmatprep.subr.mxu0 0.0
    %878 = vmatpush1.xpose.msra.mxu0 0.0
    %879 = vmatprep.subr.mxu0 0.0
    %880 = vmatpush1.xpose.msra.mxu0 0.0
    %881 = vmatprep.subr.mxu0 0.0
    %882 = vmatpush1.xpose.msra.mxu0 0.0
    %883 = vmatprep.subr.mxu0 0.0
    %884 = vmatpush1.xpose.msra.mxu0 0.0
    %885 = vmatprep.subr.mxu0 0.0
    %886 = vmatpush1.xpose.msra.mxu0 0.0
    %887 = vmatprep.subr.mxu0 0.0
    %888 = vmatpush1.xpose.msra.mxu0 0.0
    %889 = vmatprep.subr.mxu0 0.0
    %890 = vmatpush1.xpose.msra.mxu0 0.0
    %891 = vmatprep.subr.mxu0 0.0
    %892 = vmatpush1.xpose.msra.mxu0 0.0
    %893 = vmatprep.subr.mxu0 0.0
    %894 = vmatpush1.xpose.msra.mxu0 0.0
    %895 = vmatprep.subr.mxu0 0.0
    %896 = vmatpush1.xpose.msra.mxu0 0.0
    %897 = vmatprep.subr.mxu0 0.0
    %898 = vmatpush1.xpose.msra.mxu0 0.0
    %899 = vmatprep.subr.mxu0 0.0
    %900 = vmatpush1.xpose.msra.mxu0 0.0
    %901 = vmatprep.subr.mxu0 0.0
    %902 = vmatpush1.xpose.msra.mxu0 0.0
    %903 = vmatprep.subr.mxu0 0.0
    %904 = vmatpush1.xpose.msra.mxu0 0.0
    %905 = vmatprep.subr.mxu0 0.0
    %906 = vmatpush1.xpose.msra.mxu0 0.0
    %907 = vmatprep.subr.mxu0 0.0
    %908 = vmatpush1.xpose.msra.mxu0 0.0
    %909 = vmatprep.subr.mxu0 0.0
    %910 = vmatpush1.xpose.msra.mxu0 0.0
    %911 = vmatprep.subr.mxu0 0.0
    %912 = vmatpush1.xpose.msra.mxu0 0.0
    %913 = vmatprep.subr.mxu0 0.0
    %914 = vmatpush1.xpose.msra.mxu0 0.0
    %915 = vmatprep.subr.mxu0 0.0
    %916 = vmatpush1.xpose.msra.mxu0 0.0
    %917 = vmatprep.subr.mxu0 0.0
    %918 = vmatpush1.xpose.msra.mxu0 0.0
    %919 = vmatprep.subr.mxu0 0.0
    %920 = vmatpush1.xpose.msra.mxu0 0.0
    %921 = vmatprep.subr.mxu0 0.0
    %922 = vmatpush1.xpose.msra.mxu0 0.0
    %923 = vmatprep.subr.mxu0 0.0
    %924 = vmatpush1.xpose.msra.mxu0 0.0
    %925 = vmatprep.mubr.f32.mxu0 0.0
    %926 = vmatmul.mubr.f32.gmra.mrb[0].mxu0 %v853
    %v927 = vpop.f32.mrb[0].mxu0
    %v928 = vadd.f32 0.0, %v927
    %v929 = vpop.f32.mrb[0].mxu0
    %930 = vdwg.mxu0
    %v932 = vsel %vm676, %v221, 0
    %v935 = vsel %vm676, %v758, 0
    %v938 = vsel %vm676, %v760, 0
    %940 = vmatprep.subr.mxu0 0.0
    %941 = vmatpush1.xpose.msra.mxu0 %v935
    %942 = vmatprep.subr.mxu0 0.0
    %943 = vmatpush1.xpose.msra.mxu0 %v938
    %944 = vmatprep.subr.mxu0 0.0
    %945 = vmatpush1.xpose.msra.mxu0 0.0
    %946 = vmatprep.subr.mxu0 0.0
    %947 = vmatpush1.xpose.msra.mxu0 0.0
    %948 = vmatprep.subr.mxu0 0.0
    %949 = vmatpush1.xpose.msra.mxu0 0.0
    %950 = vmatprep.subr.mxu0 0.0
    %951 = vmatpush1.xpose.msra.mxu0 0.0
    %952 = vmatprep.subr.mxu0 0.0
    %953 = vmatpush1.xpose.msra.mxu0 0.0
    %954 = vmatprep.subr.mxu0 0.0
    %955 = vmatpush1.xpose.msra.mxu0 0.0
    %956 = vmatprep.subr.mxu0 0.0
    %957 = vmatpush1.xpose.msra.mxu0 0.0
    %958 = vmatprep.subr.mxu0 0.0
    %959 = vmatpush1.xpose.msra.mxu0 0.0
    %960 = vmatprep.subr.mxu0 0.0
    %961 = vmatpush1.xpose.msra.mxu0 0.0
    %962 = vmatprep.subr.mxu0 0.0
    %963 = vmatpush1.xpose.msra.mxu0 0.0
    %964 = vmatprep.subr.mxu0 0.0
    %965 = vmatpush1.xpose.msra.mxu0 0.0
    %966 = vmatprep.subr.mxu0 0.0
    %967 = vmatpush1.xpose.msra.mxu0 0.0
    %968 = vmatprep.subr.mxu0 0.0
    %969 = vmatpush1.xpose.msra.mxu0 0.0
    %970 = vmatprep.subr.mxu0 0.0
    %971 = vmatpush1.xpose.msra.mxu0 0.0
    %972 = vmatprep.subr.mxu0 0.0
    %973 = vmatpush1.xpose.msra.mxu0 0.0
    %974 = vmatprep.subr.mxu0 0.0
    %975 = vmatpush1.xpose.msra.mxu0 0.0
    %976 = vmatprep.subr.mxu0 0.0
    %977 = vmatpush1.xpose.msra.mxu0 0.0
    %978 = vmatprep.subr.mxu0 0.0
    %979 = vmatpush1.xpose.msra.mxu0 0.0
    %980 = vmatprep.subr.mxu0 0.0
    %981 = vmatpush1.xpose.msra.mxu0 0.0
    %982 = vmatprep.subr.mxu0 0.0
    %983 = vmatpush1.xpose.msra.mxu0 0.0
    %984 = vmatprep.subr.mxu0 0.0
    %985 = vmatpush1.xpose.msra.mxu0 0.0
    %986 = vmatprep.subr.mxu0 0.0
    %987 = vmatpush1.xpose.msra.mxu0 0.0
    %988 = vmatprep.subr.mxu0 0.0
    %989 = vmatpush1.xpose.msra.mxu0 0.0
    %990 = vmatprep.subr.mxu0 0.0
    %991 = vmatpush1.xpose.msra.mxu0 0.0
    %992 = vmatprep.subr.mxu0 0.0
    %993 = vmatpush1.xpose.msra.mxu0 0.0
    %994 = vmatprep.subr.mxu0 0.0
    %995 = vmatpush1.xpose.msra.mxu0 0.0
    %996 = vmatprep.subr.mxu0 0.0
    %997 = vmatpush1.xpose.msra.mxu0 0.0
    %998 = vmatprep.subr.mxu0 0.0
    %999 = vmatpush1.xpose.msra.mxu0 0.0
    %1000 = vmatprep.subr.mxu0 0.0
    %1001 = vmatpush1.xpose.msra.mxu0 0.0
    %1002 = vmatprep.subr.mxu0 0.0
    %1003 = vmatpush1.xpose.msra.mxu0 0.0
    %1004 = vmatprep.mubr.f32.mxu0 0.0
    %1005 = vmatmul.mubr.f32.gmra.mrb[0].mxu0 %v932
    %v1006 = vpop.f32.mrb[0].mxu0
    %v1007 = vadd.f32 0.0, %v1006
    %v1008 = vpop.f32.mrb[0].mxu0
    %1009 = vdwg.mxu0
    %v1011 = vsel %vm676, %v222, 0
    %v1014 = vsel %vm676, %v762, 0
    %v1017 = vsel %vm676, %v764, 0
    %1019 = vmatprep.subr.mxu0 0.0
    %1020 = vmatpush1.xpose.msra.mxu0 %v1014
    %1021 = vmatprep.subr.mxu0 0.0
    %1022 = vmatpush1.xpose.msra.mxu0 %v1017
    %1023 = vmatprep.subr.mxu0 0.0
    %1024 = vmatpush1.xpose.msra.mxu0 0.0
    %1025 = vmatprep.subr.mxu0 0.0
    %1026 = vmatpush1.xpose.msra.mxu0 0.0
    %1027 = vmatprep.subr.mxu0 0.0
    %1028 = vmatpush1.xpose.msra.mxu0 0.0
    %1029 = vmatprep.subr.mxu0 0.0
    %1030 = vmatpush1.xpose.msra.mxu0 0.0
    %1031 = vmatprep.subr.mxu0 0.0
    %1032 = vmatpush1.xpose.msra.mxu0 0.0
    %1033 = vmatprep.subr.mxu0 0.0
    %1034 = vmatpush1.xpose.msra.mxu0 0.0
    %1035 = vmatprep.subr.mxu0 0.0
    %1036 = vmatpush1.xpose.msra.mxu0 0.0
    %1037 = vmatprep.subr.mxu0 0.0
    %1038 = vmatpush1.xpose.msra.mxu0 0.0
    %1039 = vmatprep.subr.mxu0 0.0
    %1040 = vmatpush1.xpose.msra.mxu0 0.0
    %1041 = vmatprep.subr.mxu0 0.0
    %1042 = vmatpush1.xpose.msra.mxu0 0.0
    %1043 = vmatprep.subr.mxu0 0.0
    %1044 = vmatpush1.xpose.msra.mxu0 0.0
    %1045 = vmatprep.subr.mxu0 0.0
    %1046 = vmatpush1.xpose.msra.mxu0 0.0
    %1047 = vmatprep.subr.mxu0 0.0
    %1048 = vmatpush1.xpose.msra.mxu0 0.0
    %1049 = vmatprep.subr.mxu0 0.0
    %1050 = vmatpush1.xpose.msra.mxu0 0.0
    %1051 = vmatprep.subr.mxu0 0.0
    %1052 = vmatpush1.xpose.msra.mxu0 0.0
    %1053 = vmatprep.subr.mxu0 0.0
    %1054 = vmatpush1.xpose.msra.mxu0 0.0
    %1055 = vmatprep.subr.mxu0 0.0
    %1056 = vmatpush1.xpose.msra.mxu0 0.0
    %1057 = vmatprep.subr.mxu0 0.0
    %1058 = vmatpush1.xpose.msra.mxu0 0.0
    %1059 = vmatprep.subr.mxu0 0.0
    %1060 = vmatpush1.xpose.msra.mxu0 0.0
    %1061 = vmatprep.subr.mxu0 0.0
    %1062 = vmatpush1.xpose.msra.mxu0 0.0
    %1063 = vmatprep.subr.mxu0 0.0
    %1064 = vmatpush1.xpose.msra.mxu0 0.0
    %1065 = vmatprep.subr.mxu0 0.0
    %1066 = vmatpush1.xpose.msra.mxu0 0.0
    %1067 = vmatprep.subr.mxu0 0.0
    %1068 = vmatpush1.xpose.msra.mxu0 0.0
    %1069 = vmatprep.subr.mxu0 0.0
    %1070 = vmatpush1.xpose.msra.mxu0 0.0
    %1071 = vmatprep.subr.mxu0 0.0
    %1072 = vmatpush1.xpose.msra.mxu0 0.0
    %1073 = vmatprep.subr.mxu0 0.0
    %1074 = vmatpush1.xpose.msra.mxu0 0.0
    %1075 = vmatprep.subr.mxu0 0.0
    %1076 = vmatpush1.xpose.msra.mxu0 0.0
    %1077 = vmatprep.subr.mxu0 0.0
    %1078 = vmatpush1.xpose.msra.mxu0 0.0
    %1079 = vmatprep.subr.mxu0 0.0
    %1080 = vmatpush1.xpose.msra.mxu0 0.0
    %1081 = vmatprep.subr.mxu0 0.0
    %1082 = vmatpush1.xpose.msra.mxu0 0.0
    %1083 = vmatprep.mubr.f32.mxu0 0.0
    %1084 = vmatmul.mubr.f32.gmra.mrb[0].mxu0 %v1011
    %v1085 = vpop.f32.mrb[0].mxu0
    %v1086 = vadd.f32 0.0, %v1085
    %v1087 = vpop.f32.mrb[0].mxu0
    %1088 = vdwg.mxu0
    %1089 = vst.msk [vmem:[#allocation3] sm:$0xff] %vm676, %v849
    %1090 = vst.msk [vmem:[#allocation3 + $0x8] sm:$0xff] %vm676, %v928
    %1091 = vst.msk [vmem:[#allocation3 + $0x10] sm:$0xff] %vm676, %v1007
    %1092 = vst.msk [vmem:[#allocation3 + $0x18] sm:$0xff] %vm676, %v1086
    %v1093 = vld [vmem:[#allocation2] sm:$0xff]
    %v1094 = vld [vmem:[#allocation2 + $0x8] sm:$0xff]
    %v1095 = vld [vmem:[#allocation2 + $0x10] sm:$0xff]
    %v1096 = vld [vmem:[#allocation2 + $0x18] sm:$0xff]
    %v1097 = vld [vmem:[#allocation2 + $0x20] sm:$0xff]
    %v1098 = vld [vmem:[#allocation2 + $0x28] sm:$0xff]
    %v1099 = vld [vmem:[#allocation2 + $0x30] sm:$0xff]
    %v1100 = vld [vmem:[#allocation2 + $0x38] sm:$0xff]
    %v1101 = vld [vmem:[#allocation2 + $0x40] sm:$0xff]
    %v1102 = vld [vmem:[#allocation2 + $0x48] sm:$0xff]
    %v1103 = vld [vmem:[#allocation2 + $0x50] sm:$0xff]
    %v1104 = vld [vmem:[#allocation2 + $0x58] sm:$0xff]
    %1106 = vrot.lane.b32.xlu0 %v1093, 112
    %v1107 = vpop.permute.xlu0 %1106
    %1109 = vxpose.xlu0.b32.start [1/16] %v1107, 128
    %1110 = vxpose.xlu0.b32.cont [2/16] 0.0, 128
    %1111 = vxpose.xlu0.b32.cont [3/16] 0.0, 128
    %1112 = vxpose.xlu0.b32.cont [4/16] 0.0, 128
    %1113 = vxpose.xlu0.b32.cont [5/16] 0.0, 128
    %1114 = vxpose.xlu0.b32.cont [6/16] 0.0, 128
    %1115 = vxpose.xlu0.b32.cont [7/16] 0.0, 128
    %1116 = vxpose.xlu0.b32.cont [8/16] 0.0, 128
    %1117 = vxpose.xlu0.b32.cont [9/16] 0.0, 128
    %1118 = vxpose.xlu0.b32.cont [10/16] 0.0, 128
    %1119 = vxpose.xlu0.b32.cont [11/16] 0.0, 128
    %1120 = vxpose.xlu0.b32.cont [12/16] 0.0, 128
    %1121 = vxpose.xlu0.b32.cont [13/16] 0.0, 128
    %1122 = vxpose.xlu0.b32.cont [14/16] 0.0, 128
    %1123 = vxpose.xlu0.b32.cont [15/16] 0.0, 128
    %1124 = vxpose.xlu0.b32.end [16/16] 0.0, 128
    %v1125 = vpop.trf.xlu0
    %v1126 = vpop.trf.xlu0
    %v1127 = vpop.trf.xlu0
    %v1128 = vpop.trf.xlu0
    %v1129 = vpop.trf.xlu0
    %v1130 = vpop.trf.xlu0
    %v1131 = vpop.trf.xlu0
    %v1132 = vpop.trf.xlu0
    %v1133 = vpop.trf.xlu0
    %v1134 = vpop.trf.xlu0
    %v1135 = vpop.trf.xlu0
    %v1136 = vpop.trf.xlu0
    %v1137 = vpop.trf.xlu0
    %v1138 = vpop.trf.xlu0
    %v1139 = vpop.trf.xlu0
    %v1140 = vpop.trf.xlu0
    %1142 = vrot.lane.b32.xlu0 %v1097, 112
    %v1143 = vpop.permute.xlu0 %1142
    %v1146 = vsel %vm255, %v1125, 0
    %v1149 = vsel %vm255, %v1126, 0
    %1151 = vmatprep.subr.mxu0 0.0
    %1152 = vmatpush1.msra.mxu0 %v1143
    %1153 = vmatprep.subr.mxu0 0.0
    %1154 = vmatpush1.msra.mxu0 0.0
    %1155 = vmatprep.subr.mxu0 0.0
    %1156 = vmatpush1.msra.mxu0 0.0
    %1157 = vmatprep.subr.mxu0 0.0
    %1158 = vmatpush1.msra.mxu0 0.0
    %1159 = vmatprep.subr.mxu0 0.0
    %1160 = vmatpush1.msra.mxu0 0.0
    %1161 = vmatprep.subr.mxu0 0.0
    %1162 = vmatpush1.msra.mxu0 0.0
    %1163 = vmatprep.subr.mxu0 0.0
    %1164 = vmatpush1.msra.mxu0 0.0
    %1165 = vmatprep.subr.mxu0 0.0
    %1166 = vmatpush1.msra.mxu0 0.0
    %1167 = vmatprep.subr.mxu0 0.0
    %1168 = vmatpush1.msra.mxu0 0.0
    %1169 = vmatprep.subr.mxu0 0.0
    %1170 = vmatpush1.msra.mxu0 0.0
    %1171 = vmatprep.subr.mxu0 0.0
    %1172 = vmatpush1.msra.mxu0 0.0
    %1173 = vmatprep.subr.mxu0 0.0
    %1174 = vmatpush1.msra.mxu0 0.0
    %1175 = vmatprep.subr.mxu0 0.0
    %1176 = vmatpush1.msra.mxu0 0.0
    %1177 = vmatprep.subr.mxu0 0.0
    %1178 = vmatpush1.msra.mxu0 0.0
    %1179 = vmatprep.subr.mxu0 0.0
    %1180 = vmatpush1.msra.mxu0 0.0
    %1181 = vmatprep.subr.mxu0 0.0
    %1182 = vmatpush1.msra.mxu0 0.0
    %1183 = vmatprep.subr.mxu0 0.0
    %1184 = vmatpush1.msra.mxu0 0.0
    %1185 = vmatprep.subr.mxu0 0.0
    %1186 = vmatpush1.msra.mxu0 0.0
    %1187 = vmatprep.subr.mxu0 0.0
    %1188 = vmatpush1.msra.mxu0 0.0
    %1189 = vmatprep.subr.mxu0 0.0
    %1190 = vmatpush1.msra.mxu0 0.0
    %1191 = vmatprep.subr.mxu0 0.0
    %1192 = vmatpush1.msra.mxu0 0.0
    %1193 = vmatprep.subr.mxu0 0.0
    %1194 = vmatpush1.msra.mxu0 0.0
    %1195 = vmatprep.subr.mxu0 0.0
    %1196 = vmatpush1.msra.mxu0 0.0
    %1197 = vmatprep.subr.mxu0 0.0
    %1198 = vmatpush1.msra.mxu0 0.0
    %1199 = vmatprep.subr.mxu0 0.0
    %1200 = vmatpush1.msra.mxu0 0.0
    %1201 = vmatprep.subr.mxu0 0.0
    %1202 = vmatpush1.msra.mxu0 0.0
    %1203 = vmatprep.subr.mxu0 0.0
    %1204 = vmatpush1.msra.mxu0 0.0
    %1205 = vmatprep.subr.mxu0 0.0
    %1206 = vmatpush1.msra.mxu0 0.0
    %1207 = vmatprep.subr.mxu0 0.0
    %1208 = vmatpush1.msra.mxu0 0.0
    %1209 = vmatprep.subr.mxu0 0.0
    %1210 = vmatpush1.msra.mxu0 0.0
    %1211 = vmatprep.subr.mxu0 0.0
    %1212 = vmatpush1.msra.mxu0 0.0
    %1213 = vmatprep.subr.mxu0 0.0
    %1214 = vmatpush1.msra.mxu0 0.0
    %1215 = vmatprep.mubr.f32.mxu0 0.0
    %1216 = vmatmul.mubr.f32.gmra.mrb[0].mxu0 %v1146
    %v1217 = vpop.f32.mrb[0].mxu0
    %v1218 = vadd.f32 0.0, %v1217
    %v1219 = vpop.f32.mrb[0].mxu0
    %1220 = vmatprep.mubr.f32.mxu0 0.0
    %1221 = vmatmul.mubr.f32.gmra.mrb[0].mxu0 %v1149
    %v1222 = vpop.f32.mrb[0].mxu0
    %v1223 = vadd.f32 0.0, %v1222
    %v1224 = vpop.f32.mrb[0].mxu0
    %1225 = vdwg.mxu0
    %1227 = vrot.lane.b32.xlu0 %v1094, 112
    %v1228 = vpop.permute.xlu0 %1227
    %1230 = vxpose.xlu0.b32.start [1/16] %v1228, 128
    %1231 = vxpose.xlu0.b32.cont [2/16] 0.0, 128
    %1232 = vxpose.xlu0.b32.cont [3/16] 0.0, 128
    %1233 = vxpose.xlu0.b32.cont [4/16] 0.0, 128
    %1234 = vxpose.xlu0.b32.cont [5/16] 0.0, 128
    %1235 = vxpose.xlu0.b32.cont [6/16] 0.0, 128
    %1236 = vxpose.xlu0.b32.cont [7/16] 0.0, 128
    %1237 = vxpose.xlu0.b32.cont [8/16] 0.0, 128
    %1238 = vxpose.xlu0.b32.cont [9/16] 0.0, 128
    %1239 = vxpose.xlu0.b32.cont [10/16] 0.0, 128
    %1240 = vxpose.xlu0.b32.cont [11/16] 0.0, 128
    %1241 = vxpose.xlu0.b32.cont [12/16] 0.0, 128
    %1242 = vxpose.xlu0.b32.cont [13/16] 0.0, 128
    %1243 = vxpose.xlu0.b32.cont [14/16] 0.0, 128
    %1244 = vxpose.xlu0.b32.cont [15/16] 0.0, 128
    %1245 = vxpose.xlu0.b32.end [16/16] 0.0, 128
    %v1246 = vpop.trf.xlu0
    %v1247 = vpop.trf.xlu0
    %v1248 = vpop.trf.xlu0
    %v1249 = vpop.trf.xlu0
    %v1250 = vpop.trf.xlu0
    %v1251 = vpop.trf.xlu0
    %v1252 = vpop.trf.xlu0
    %v1253 = vpop.trf.xlu0
    %v1254 = vpop.trf.xlu0
    %v1255 = vpop.trf.xlu0
    %v1256 = vpop.trf.xlu0
    %v1257 = vpop.trf.xlu0
    %v1258 = vpop.trf.xlu0
    %v1259 = vpop.trf.xlu0
    %v1260 = vpop.trf.xlu0
    %v1261 = vpop.trf.xlu0
    %1263 = vrot.lane.b32.xlu0 %v1098, 112
    %v1264 = vpop.permute.xlu0 %1263
    %v1267 = vsel %vm255, %v1246, 0
    %v1270 = vsel %vm255, %v1247, 0
    %1272 = vmatprep.subr.mxu0 0.0
    %1273 = vmatpush1.msra.mxu0 %v1264
    %1274 = vmatprep.subr.mxu0 0.0
    %1275 = vmatpush1.msra.mxu0 0.0
    %1276 = vmatprep.subr.mxu0 0.0
    %1277 = vmatpush1.msra.mxu0 0.0
    %1278 = vmatprep.subr.mxu0 0.0
    %1279 = vmatpush1.msra.mxu0 0.0
    %1280 = vmatprep.subr.mxu0 0.0
    %1281 = vmatpush1.msra.mxu0 0.0
    %1282 = vmatprep.subr.mxu0 0.0
    %1283 = vmatpush1.msra.mxu0 0.0
    %1284 = vmatprep.subr.mxu0 0.0
    %1285 = vmatpush1.msra.mxu0 0.0
    %1286 = vmatprep.subr.mxu0 0.0
    %1287 = vmatpush1.msra.mxu0 0.0
    %1288 = vmatprep.subr.mxu0 0.0
    %1289 = vmatpush1.msra.mxu0 0.0
    %1290 = vmatprep.subr.mxu0 0.0
    %1291 = vmatpush1.msra.mxu0 0.0
    %1292 = vmatprep.subr.mxu0 0.0
    %1293 = vmatpush1.msra.mxu0 0.0
    %1294 = vmatprep.subr.mxu0 0.0
    %1295 = vmatpush1.msra.mxu0 0.0
    %1296 = vmatprep.subr.mxu0 0.0
    %1297 = vmatpush1.msra.mxu0 0.0
    %1298 = vmatprep.subr.mxu0 0.0
    %1299 = vmatpush1.msra.mxu0 0.0
    %1300 = vmatprep.subr.mxu0 0.0
    %1301 = vmatpush1.msra.mxu0 0.0
    %1302 = vmatprep.subr.mxu0 0.0
    %1303 = vmatpush1.msra.mxu0 0.0
    %1304 = vmatprep.subr.mxu0 0.0
    %1305 = vmatpush1.msra.mxu0 0.0
    %1306 = vmatprep.subr.mxu0 0.0
    %1307 = vmatpush1.msra.mxu0 0.0
    %1308 = vmatprep.subr.mxu0 0.0
    %1309 = vmatpush1.msra.mxu0 0.0
    %1310 = vmatprep.subr.mxu0 0.0
    %1311 = vmatpush1.msra.mxu0 0.0
    %1312 = vmatprep.subr.mxu0 0.0
    %1313 = vmatpush1.msra.mxu0 0.0
    %1314 = vmatprep.subr.mxu0 0.0
    %1315 = vmatpush1.msra.mxu0 0.0
    %1316 = vmatprep.subr.mxu0 0.0
    %1317 = vmatpush1.msra.mxu0 0.0
    %1318 = vmatprep.subr.mxu0 0.0
    %1319 = vmatpush1.msra.mxu0 0.0
    %1320 = vmatprep.subr.mxu0 0.0
    %1321 = vmatpush1.msra.mxu0 0.0
    %1322 = vmatprep.subr.mxu0 0.0
    %1323 = vmatpush1.msra.mxu0 0.0
    %1324 = vmatprep.subr.mxu0 0.0
    %1325 = vmatpush1.msra.mxu0 0.0
    %1326 = vmatprep.subr.mxu0 0.0
    %1327 = vmatpush1.msra.mxu0 0.0
    %1328 = vmatprep.subr.mxu0 0.0
    %1329 = vmatpush1.msra.mxu0 0.0
    %1330 = vmatprep.subr.mxu0 0.0
    %1331 = vmatpush1.msra.mxu0 0.0
    %1332 = vmatprep.subr.mxu0 0.0
    %1333 = vmatpush1.msra.mxu0 0.0
    %1334 = vmatprep.subr.mxu0 0.0
    %1335 = vmatpush1.msra.mxu0 0.0
    %1336 = vmatprep.mubr.f32.mxu0 0.0
    %1337 = vmatmul.mubr.f32.gmra.mrb[0].mxu0 %v1267
    %v1338 = vpop.f32.mrb[0].mxu0
    %v1339 = vadd.f32 0.0, %v1338
    %v1340 = vpop.f32.mrb[0].mxu0
    %1341 = vmatprep.mubr.f32.mxu0 0.0
    %1342 = vmatmul.mubr.f32.gmra.mrb[0].mxu0 %v1270
    %v1343 = vpop.f32.mrb[0].mxu0
    %v1344 = vadd.f32 0.0, %v1343
    %v1345 = vpop.f32.mrb[0].mxu0
    %1346 = vdwg.mxu0
    %1348 = vrot.lane.b32.xlu0 %v1095, 112
    %v1349 = vpop.permute.xlu0 %1348
    %1351 = vxpose.xlu0.b32.start [1/16] %v1349, 128
    %1352 = vxpose.xlu0.b32.cont [2/16] 0.0, 128
    %1353 = vxpose.xlu0.b32.cont [3/16] 0.0, 128
    %1354 = vxpose.xlu0.b32.cont [4/16] 0.0, 128
    %1355 = vxpose.xlu0.b32.cont [5/16] 0.0, 128
    %1356 = vxpose.xlu0.b32.cont [6/16] 0.0, 128
    %1357 = vxpose.xlu0.b32.cont [7/16] 0.0, 128
    %1358 = vxpose.xlu0.b32.cont [8/16] 0.0, 128
    %1359 = vxpose.xlu0.b32.cont [9/16] 0.0, 128
    %1360 = vxpose.xlu0.b32.cont [10/16] 0.0, 128
    %1361 = vxpose.xlu0.b32.cont [11/16] 0.0, 128
    %1362 = vxpose.xlu0.b32.cont [12/16] 0.0, 128
    %1363 = vxpose.xlu0.b32.cont [13/16] 0.0, 128
    %1364 = vxpose.xlu0.b32.cont [14/16] 0.0, 128
    %1365 = vxpose.xlu0.b32.cont [15/16] 0.0, 128
    %1366 = vxpose.xlu0.b32.end [16/16] 0.0, 128
    %v1367 = vpop.trf.xlu0
    %v1368 = vpop.trf.xlu0
    %v1369 = vpop.trf.xlu0
    %v1370 = vpop.trf.xlu0
    %v1371 = vpop.trf.xlu0
    %v1372 = vpop.trf.xlu0
    %v1373 = vpop.trf.xlu0
    %v1374 = vpop.trf.xlu0
    %v1375 = vpop.trf.xlu0
    %v1376 = vpop.trf.xlu0
    %v1377 = vpop.trf.xlu0
    %v1378 = vpop.trf.xlu0
    %v1379 = vpop.trf.xlu0
    %v1380 = vpop.trf.xlu0
    %v1381 = vpop.trf.xlu0
    %v1382 = vpop.trf.xlu0
    %1384 = vrot.lane.b32.xlu0 %v1099, 112
    %v1385 = vpop.permute.xlu0 %1384
    %v1388 = vsel %vm255, %v1367, 0
    %v1391 = vsel %vm255, %v1368, 0
    %1393 = vmatprep.subr.mxu0 0.0
    %1394 = vmatpush1.msra.mxu0 %v1385
    %1395 = vmatprep.subr.mxu0 0.0
    %1396 = vmatpush1.msra.mxu0 0.0
    %1397 = vmatprep.subr.mxu0 0.0
    %1398 = vmatpush1.msra.mxu0 0.0
    %1399 = vmatprep.subr.mxu0 0.0
    %1400 = vmatpush1.msra.mxu0 0.0
    %1401 = vmatprep.subr.mxu0 0.0
    %1402 = vmatpush1.msra.mxu0 0.0
    %1403 = vmatprep.subr.mxu0 0.0
    %1404 = vmatpush1.msra.mxu0 0.0
    %1405 = vmatprep.subr.mxu0 0.0
    %1406 = vmatpush1.msra.mxu0 0.0
    %1407 = vmatprep.subr.mxu0 0.0
    %1408 = vmatpush1.msra.mxu0 0.0
    %1409 = vmatprep.subr.mxu0 0.0
    %1410 = vmatpush1.msra.mxu0 0.0
    %1411 = vmatprep.subr.mxu0 0.0
    %1412 = vmatpush1.msra.mxu0 0.0
    %1413 = vmatprep.subr.mxu0 0.0
    %1414 = vmatpush1.msra.mxu0 0.0
    %1415 = vmatprep.subr.mxu0 0.0
    %1416 = vmatpush1.msra.mxu0 0.0
    %1417 = vmatprep.subr.mxu0 0.0
    %1418 = vmatpush1.msra.mxu0 0.0
    %1419 = vmatprep.subr.mxu0 0.0
    %1420 = vmatpush1.msra.mxu0 0.0
    %1421 = vmatprep.subr.mxu0 0.0
    %1422 = vmatpush1.msra.mxu0 0.0
    %1423 = vmatprep.subr.mxu0 0.0
    %1424 = vmatpush1.msra.mxu0 0.0
    %1425 = vmatprep.subr.mxu0 0.0
    %1426 = vmatpush1.msra.mxu0 0.0
    %1427 = vmatprep.subr.mxu0 0.0
    %1428 = vmatpush1.msra.mxu0 0.0
    %1429 = vmatprep.subr.mxu0 0.0
    %1430 = vmatpush1.msra.mxu0 0.0
    %1431 = vmatprep.subr.mxu0 0.0
    %1432 = vmatpush1.msra.mxu0 0.0
    %1433 = vmatprep.subr.mxu0 0.0
    %1434 = vmatpush1.msra.mxu0 0.0
    %1435 = vmatprep.subr.mxu0 0.0
    %1436 = vmatpush1.msra.mxu0 0.0
    %1437 = vmatprep.subr.mxu0 0.0
    %1438 = vmatpush1.msra.mxu0 0.0
    %1439 = vmatprep.subr.mxu0 0.0
    %1440 = vmatpush1.msra.mxu0 0.0
    %1441 = vmatprep.subr.mxu0 0.0
    %1442 = vmatpush1.msra.mxu0 0.0
    %1443 = vmatprep.subr.mxu0 0.0
    %1444 = vmatpush1.msra.mxu0 0.0
    %1445 = vmatprep.subr.mxu0 0.0
    %1446 = vmatpush1.msra.mxu0 0.0
    %1447 = vmatprep.subr.mxu0 0.0
    %1448 = vmatpush1.msra.mxu0 0.0
    %1449 = vmatprep.subr.mxu0 0.0
    %1450 = vmatpush1.msra.mxu0 0.0
    %1451 = vmatprep.subr.mxu0 0.0
    %1452 = vmatpush1.msra.mxu0 0.0
    %1453 = vmatprep.subr.mxu0 0.0
    %1454 = vmatpush1.msra.mxu0 0.0
    %1455 = vmatprep.subr.mxu0 0.0
    %1456 = vmatpush1.msra.mxu0 0.0
    %1457 = vmatprep.mubr.f32.mxu0 0.0
    %1458 = vmatmul.mubr.f32.gmra.mrb[0].mxu0 %v1388
    %v1459 = vpop.f32.mrb[0].mxu0
    %v1460 = vadd.f32 0.0, %v1459
    %v1461 = vpop.f32.mrb[0].mxu0
    %1462 = vmatprep.mubr.f32.mxu0 0.0
    %1463 = vmatmul.mubr.f32.gmra.mrb[0].mxu0 %v1391
    %v1464 = vpop.f32.mrb[0].mxu0
    %v1465 = vadd.f32 0.0, %v1464
    %v1466 = vpop.f32.mrb[0].mxu0
    %1467 = vdwg.mxu0
    %1469 = vrot.lane.b32.xlu0 %v1096, 112
    %v1470 = vpop.permute.xlu0 %1469
    %1472 = vxpose.xlu0.b32.start [1/16] %v1470, 128
    %1473 = vxpose.xlu0.b32.cont [2/16] 0.0, 128
    %1474 = vxpose.xlu0.b32.cont [3/16] 0.0, 128
    %1475 = vxpose.xlu0.b32.cont [4/16] 0.0, 128
    %1476 = vxpose.xlu0.b32.cont [5/16] 0.0, 128
    %1477 = vxpose.xlu0.b32.cont [6/16] 0.0, 128
    %1478 = vxpose.xlu0.b32.cont [7/16] 0.0, 128
    %1479 = vxpose.xlu0.b32.cont [8/16] 0.0, 128
    %1480 = vxpose.xlu0.b32.cont [9/16] 0.0, 128
    %1481 = vxpose.xlu0.b32.cont [10/16] 0.0, 128
    %1482 = vxpose.xlu0.b32.cont [11/16] 0.0, 128
    %1483 = vxpose.xlu0.b32.cont [12/16] 0.0, 128
    %1484 = vxpose.xlu0.b32.cont [13/16] 0.0, 128
    %1485 = vxpose.xlu0.b32.cont [14/16] 0.0, 128
    %1486 = vxpose.xlu0.b32.cont [15/16] 0.0, 128
    %1487 = vxpose.xlu0.b32.end [16/16] 0.0, 128
    %v1488 = vpop.trf.xlu0
    %v1489 = vpop.trf.xlu0
    %v1490 = vpop.trf.xlu0
    %v1491 = vpop.trf.xlu0
    %v1492 = vpop.trf.xlu0
    %v1493 = vpop.trf.xlu0
    %v1494 = vpop.trf.xlu0
    %v1495 = vpop.trf.xlu0
    %v1496 = vpop.trf.xlu0
    %v1497 = vpop.trf.xlu0
    %v1498 = vpop.trf.xlu0
    %v1499 = vpop.trf.xlu0
    %v1500 = vpop.trf.xlu0
    %v1501 = vpop.trf.xlu0
    %v1502 = vpop.trf.xlu0
    %v1503 = vpop.trf.xlu0
    %1505 = vrot.lane.b32.xlu0 %v1100, 112
    %v1506 = vpop.permute.xlu0 %1505
    %v1509 = vsel %vm255, %v1488, 0
    %v1512 = vsel %vm255, %v1489, 0
    %1514 = vmatprep.subr.mxu0 0.0
    %1515 = vmatpush1.msra.mxu0 %v1506
    %1516 = vmatprep.subr.mxu0 0.0
    %1517 = vmatpush1.msra.mxu0 0.0
    %1518 = vmatprep.subr.mxu0 0.0
    %1519 = vmatpush1.msra.mxu0 0.0
    %1520 = vmatprep.subr.mxu0 0.0
    %1521 = vmatpush1.msra.mxu0 0.0
    %1522 = vmatprep.subr.mxu0 0.0
    %1523 = vmatpush1.msra.mxu0 0.0
    %1524 = vmatprep.subr.mxu0 0.0
    %1525 = vmatpush1.msra.mxu0 0.0
    %1526 = vmatprep.subr.mxu0 0.0
    %1527 = vmatpush1.msra.mxu0 0.0
    %1528 = vmatprep.subr.mxu0 0.0
    %1529 = vmatpush1.msra.mxu0 0.0
    %1530 = vmatprep.subr.mxu0 0.0
    %1531 = vmatpush1.msra.mxu0 0.0
    %1532 = vmatprep.subr.mxu0 0.0
    %1533 = vmatpush1.msra.mxu0 0.0
    %1534 = vmatprep.subr.mxu0 0.0
    %1535 = vmatpush1.msra.mxu0 0.0
    %1536 = vmatprep.subr.mxu0 0.0
    %1537 = vmatpush1.msra.mxu0 0.0
    %1538 = vmatprep.subr.mxu0 0.0
    %1539 = vmatpush1.msra.mxu0 0.0
    %1540 = vmatprep.subr.mxu0 0.0
    %1541 = vmatpush1.msra.mxu0 0.0
    %1542 = vmatprep.subr.mxu0 0.0
    %1543 = vmatpush1.msra.mxu0 0.0
    %1544 = vmatprep.subr.mxu0 0.0
    %1545 = vmatpush1.msra.mxu0 0.0
    %1546 = vmatprep.subr.mxu0 0.0
    %1547 = vmatpush1.msra.mxu0 0.0
    %1548 = vmatprep.subr.mxu0 0.0
    %1549 = vmatpush1.msra.mxu0 0.0
    %1550 = vmatprep.subr.mxu0 0.0
    %1551 = vmatpush1.msra.mxu0 0.0
    %1552 = vmatprep.subr.mxu0 0.0
    %1553 = vmatpush1.msra.mxu0 0.0
    %1554 = vmatprep.subr.mxu0 0.0
    %1555 = vmatpush1.msra.mxu0 0.0
    %1556 = vmatprep.subr.mxu0 0.0
    %1557 = vmatpush1.msra.mxu0 0.0
    %1558 = vmatprep.subr.mxu0 0.0
    %1559 = vmatpush1.msra.mxu0 0.0
    %1560 = vmatprep.subr.mxu0 0.0
    %1561 = vmatpush1.msra.mxu0 0.0
    %1562 = vmatprep.subr.mxu0 0.0
    %1563 = vmatpush1.msra.mxu0 0.0
    %1564 = vmatprep.subr.mxu0 0.0
    %1565 = vmatpush1.msra.mxu0 0.0
    %1566 = vmatprep.subr.mxu0 0.0
    %1567 = vmatpush1.msra.mxu0 0.0
    %1568 = vmatprep.subr.mxu0 0.0
    %1569 = vmatpush1.msra.mxu0 0.0
    %1570 = vmatprep.subr.mxu0 0.0
    %1571 = vmatpush1.msra.mxu0 0.0
    %1572 = vmatprep.subr.mxu0 0.0
    %1573 = vmatpush1.msra.mxu0 0.0
    %1574 = vmatprep.subr.mxu0 0.0
    %1575 = vmatpush1.msra.mxu0 0.0
    %1576 = vmatprep.subr.mxu0 0.0
    %1577 = vmatpush1.msra.mxu0 0.0
    %1578 = vmatprep.mubr.f32.mxu0 0.0
    %1579 = vmatmul.mubr.f32.gmra.mrb[0].mxu0 %v1509
    %v1580 = vpop.f32.mrb[0].mxu0
    %v1581 = vadd.f32 0.0, %v1580
    %v1582 = vpop.f32.mrb[0].mxu0
    %1583 = vmatprep.mubr.f32.mxu0 0.0
    %1584 = vmatmul.mubr.f32.gmra.mrb[0].mxu0 %v1512
    %v1585 = vpop.f32.mrb[0].mxu0
    %v1586 = vadd.f32 0.0, %v1585
    %v1587 = vpop.f32.mrb[0].mxu0
    %1588 = vdwg.mxu0
    %v1589 = vsel %vm676, %v1218, -inf
    %1590 = vmax.xlane.f32.xlu0 %v1589
    %v1591 = vpop.xlane.xlu0 %1590
    %v1592 = vsel %vm676, %v1223, -inf
    %1593 = vmax.xlane.f32.xlu0 %v1592
    %v1594 = vpop.xlane.xlu0 %1593
    %v1595 = vsel %vm676, %v1339, -inf
    %1596 = vmax.xlane.f32.xlu0 %v1595
    %v1597 = vpop.xlane.xlu0 %1596
    %v1598 = vsel %vm676, %v1344, -inf
    %1599 = vmax.xlane.f32.xlu0 %v1598
    %v1600 = vpop.xlane.xlu0 %1599
    %v1601 = vsel %vm676, %v1460, -inf
    %1602 = vmax.xlane.f32.xlu0 %v1601
    %v1603 = vpop.xlane.xlu0 %1602
    %v1604 = vsel %vm676, %v1465, -inf
    %1605 = vmax.xlane.f32.xlu0 %v1604
    %v1606 = vpop.xlane.xlu0 %1605
    %v1607 = vsel %vm676, %v1581, -inf
    %1608 = vmax.xlane.f32.xlu0 %v1607
    %v1609 = vpop.xlane.xlu0 %1608
    %v1610 = vsel %vm676, %v1586, -inf
    %1611 = vmax.xlane.f32.xlu0 %v1610
    %v1612 = vpop.xlane.xlu0 %1611
    %v1613 = vsub.f32 %v1218, %v1591
    %v1614 = vsub.f32 %v1223, %v1594
    %v1615 = vsub.f32 %v1339, %v1597
    %v1616 = vsub.f32 %v1344, %v1600
    %v1617 = vsub.f32 %v1460, %v1603
    %v1618 = vsub.f32 %v1465, %v1606
    %v1619 = vsub.f32 %v1581, %v1609
    %v1620 = vsub.f32 %v1586, %v1612
    %v1621 = vmul.f32 %v1613, 1.442695
    %v1622 = vpow.pop %v1621
    %v1623 = vmul.f32 %v1614, 1.442695
    %v1624 = vpow.pop %v1623
    %v1625 = vmul.f32 %v1615, 1.442695
    %v1626 = vpow.pop %v1625
    %v1627 = vmul.f32 %v1616, 1.442695
    %v1628 = vpow.pop %v1627
    %v1629 = vmul.f32 %v1617, 1.442695
    %v1630 = vpow.pop %v1629
    %v1631 = vmul.f32 %v1618, 1.442695
    %v1632 = vpow.pop %v1631
    %v1633 = vmul.f32 %v1619, 1.442695
    %v1634 = vpow.pop %v1633
    %v1635 = vmul.f32 %v1620, 1.442695
    %v1636 = vpow.pop %v1635
    %v1637 = vsel %vm676, %v1622, 0.0
    %1638 = vadd.xlane.f32.xlu0 %v1637
    %v1639 = vpop.xlane.xlu0 %1638
    %v1640 = vsel %vm676, %v1624, 0.0
    %1641 = vadd.xlane.f32.xlu0 %v1640
    %v1642 = vpop.xlane.xlu0 %1641
    %v1643 = vsel %vm676, %v1626, 0.0
    %1644 = vadd.xlane.f32.xlu0 %v1643
    %v1645 = vpop.xlane.xlu0 %1644
    %v1646 = vsel %vm676, %v1628, 0.0
    %1647 = vadd.xlane.f32.xlu0 %v1646
    %v1648 = vpop.xlane.xlu0 %1647
    %v1649 = vsel %vm676, %v1630, 0.0
    %1650 = vadd.xlane.f32.xlu0 %v1649
    %v1651 = vpop.xlane.xlu0 %1650
    %v1652 = vsel %vm676, %v1632, 0.0
    %1653 = vadd.xlane.f32.xlu0 %v1652
    %v1654 = vpop.xlane.xlu0 %1653
    %v1655 = vsel %vm676, %v1634, 0.0
    %1656 = vadd.xlane.f32.xlu0 %v1655
    %v1657 = vpop.xlane.xlu0 %1656
    %v1658 = vsel %vm676, %v1636, 0.0
    %1659 = vadd.xlane.f32.xlu0 %v1658
    %v1660 = vpop.xlane.xlu0 %1659
    %v1661 = vrcp.pop %v1639
    %v1662 = vmul.f32 %v1622, %v1661
    %v1663 = vrcp.pop %v1642
    %v1664 = vmul.f32 %v1624, %v1663
    %v1665 = vrcp.pop %v1645
    %v1666 = vmul.f32 %v1626, %v1665
    %v1667 = vrcp.pop %v1648
    %v1668 = vmul.f32 %v1628, %v1667
    %v1669 = vrcp.pop %v1651
    %v1670 = vmul.f32 %v1630, %v1669
    %v1671 = vrcp.pop %v1654
    %v1672 = vmul.f32 %v1632, %v1671
    %v1673 = vrcp.pop %v1657
    %v1674 = vmul.f32 %v1634, %v1673
    %v1675 = vrcp.pop %v1660
    %v1676 = vmul.f32 %v1636, %v1675
    %s1677 = scalar_lea.vmem [#allocation6], 64
    %1678 = vst.msk [vmem:[%s1677] sm:$0xff] %vm676, %v1662
    %1679 = vst.msk [vmem:[%s1677 + $0x8] sm:$0xff] %vm676, %v1664
    %1680 = vst.msk [vmem:[%s1677 + $0x10] sm:$0xff] %vm676, %v1666
    %1681 = vst.msk [vmem:[%s1677 + $0x18] sm:$0xff] %vm676, %v1668
    %1682 = vst.msk [vmem:[%s1677 + $0x20] sm:$0xff] %vm676, %v1670
    %1683 = vst.msk [vmem:[%s1677 + $0x28] sm:$0xff] %vm676, %v1672
    %1684 = vst.msk [vmem:[%s1677 + $0x30] sm:$0xff] %vm676, %v1674
    %1685 = vst.msk [vmem:[%s1677 + $0x38] sm:$0xff] %vm676, %v1676
    %1687 = vrot.lane.b32.xlu0 %v1101, 112
    %v1688 = vpop.permute.xlu0 %1687
    %v1689 = vsel %vm676, %v1688, 0
    %v1692 = vsel %vm676, %v1662, 0
    %v1695 = vsel %vm676, %v1664, 0
    %1697 = vmatprep.subr.mxu0 0.0
    %1698 = vmatpush1.xpose.msra.mxu0 %v1692
    %1699 = vmatprep.subr.mxu0 0.0
    %1700 = vmatpush1.xpose.msra.mxu0 %v1695
    %1701 = vmatprep.subr.mxu0 0.0
    %1702 = vmatpush1.xpose.msra.mxu0 0.0
    %1703 = vmatprep.subr.mxu0 0.0
    %1704 = vmatpush1.xpose.msra.mxu0 0.0
    %1705 = vmatprep.subr.mxu0 0.0
    %1706 = vmatpush1.xpose.msra.mxu0 0.0
    %1707 = vmatprep.subr.mxu0 0.0
    %1708 = vmatpush1.xpose.msra.mxu0 0.0
    %1709 = vmatprep.subr.mxu0 0.0
    %1710 = vmatpush1.xpose.msra.mxu0 0.0
    %1711 = vmatprep.subr.mxu0 0.0
    %1712 = vmatpush1.xpose.msra.mxu0 0.0
    %1713 = vmatprep.subr.mxu0 0.0
    %1714 = vmatpush1.xpose.msra.mxu0 0.0
    %1715 = vmatprep.subr.mxu0 0.0
    %1716 = vmatpush1.xpose.msra.mxu0 0.0
    %1717 = vmatprep.subr.mxu0 0.0
    %1718 = vmatpush1.xpose.msra.mxu0 0.0
    %1719 = vmatprep.subr.mxu0 0.0
    %1720 = vmatpush1.xpose.msra.mxu0 0.0
    %1721 = vmatprep.subr.mxu0 0.0
    %1722 = vmatpush1.xpose.msra.mxu0 0.0
    %1723 = vmatprep.subr.mxu0 0.0
    %1724 = vmatpush1.xpose.msra.mxu0 0.0
    %1725 = vmatprep.subr.mxu0 0.0
    %1726 = vmatpush1.xpose.msra.mxu0 0.0
    %1727 = vmatprep.subr.mxu0 0.0
    %1728 = vmatpush1.xpose.msra.mxu0 0.0
    %1729 = vmatprep.subr.mxu0 0.0
    %1730 = vmatpush1.xpose.msra.mxu0 0.0
    %1731 = vmatprep.subr.mxu0 0.0
    %1732 = vmatpush1.xpose.msra.mxu0 0.0
    %1733 = vmatprep.subr.mxu0 0.0
    %1734 = vmatpush1.xpose.msra.mxu0 0.0
    %1735 = vmatprep.subr.mxu0 0.0
    %1736 = vmatpush1.xpose.msra.mxu0 0.0
    %1737 = vmatprep.subr.mxu0 0.0
    %1738 = vmatpush1.xpose.msra.mxu0 0.0
    %1739 = vmatprep.subr.mxu0 0.0
    %1740 = vmatpush1.xpose.msra.mxu0 0.0
    %1741 = vmatprep.subr.mxu0 0.0
    %1742 = vmatpush1.xpose.msra.mxu0 0.0
    %1743 = vmatprep.subr.mxu0 0.0
    %1744 = vmatpush1.xpose.msra.mxu0 0.0
    %1745 = vmatprep.subr.mxu0 0.0
    %1746 = vmatpush1.xpose.msra.mxu0 0.0
    %1747 = vmatprep.subr.mxu0 0.0
    %1748 = vmatpush1.xpose.msra.mxu0 0.0
    %1749 = vmatprep.subr.mxu0 0.0
    %1750 = vmatpush1.xpose.msra.mxu0 0.0
    %1751 = vmatprep.subr.mxu0 0.0
    %1752 = vmatpush1.xpose.msra.mxu0 0.0
    %1753 = vmatprep.subr.mxu0 0.0
    %1754 = vmatpush1.xpose.msra.mxu0 0.0
    %1755 = vmatprep.subr.mxu0 0.0
    %1756 = vmatpush1.xpose.msra.mxu0 0.0
    %1757 = vmatprep.subr.mxu0 0.0
    %1758 = vmatpush1.xpose.msra.mxu0 0.0
    %1759 = vmatprep.subr.mxu0 0.0
    %1760 = vmatpush1.xpose.msra.mxu0 0.0
    %1761 = vmatprep.mubr.f32.mxu0 0.0
    %1762 = vmatmul.mubr.f32.gmra.mrb[0].mxu0 %v1689
    %v1763 = vpop.f32.mrb[0].mxu0
    %v1764 = vadd.f32 0.0, %v1763
    %v1765 = vpop.f32.mrb[0].mxu0
    %1766 = vdwg.mxu0
    %1768 = vrot.lane.b32.xlu0 %v1102, 112
    %v1769 = vpop.permute.xlu0 %1768
    %v1770 = vsel %vm676, %v1769, 0
    %v1773 = vsel %vm676, %v1666, 0
    %v1776 = vsel %vm676, %v1668, 0
    %1778 = vmatprep.subr.mxu0 0.0
    %1779 = vmatpush1.xpose.msra.mxu0 %v1773
    %1780 = vmatprep.subr.mxu0 0.0
    %1781 = vmatpush1.xpose.msra.mxu0 %v1776
    %1782 = vmatprep.subr.mxu0 0.0
    %1783 = vmatpush1.xpose.msra.mxu0 0.0
    %1784 = vmatprep.subr.mxu0 0.0
    %1785 = vmatpush1.xpose.msra.mxu0 0.0
    %1786 = vmatprep.subr.mxu0 0.0
    %1787 = vmatpush1.xpose.msra.mxu0 0.0
    %1788 = vmatprep.subr.mxu0 0.0
    %1789 = vmatpush1.xpose.msra.mxu0 0.0
    %1790 = vmatprep.subr.mxu0 0.0
    %1791 = vmatpush1.xpose.msra.mxu0 0.0
    %1792 = vmatprep.subr.mxu0 0.0
    %1793 = vmatpush1.xpose.msra.mxu0 0.0
    %1794 = vmatprep.subr.mxu0 0.0
    %1795 = vmatpush1.xpose.msra.mxu0 0.0
    %1796 = vmatprep.subr.mxu0 0.0
    %1797 = vmatpush1.xpose.msra.mxu0 0.0
    %1798 = vmatprep.subr.mxu0 0.0
    %1799 = vmatpush1.xpose.msra.mxu0 0.0
    %1800 = vmatprep.subr.mxu0 0.0
    %1801 = vmatpush1.xpose.msra.mxu0 0.0
    %1802 = vmatprep.subr.mxu0 0.0
    %1803 = vmatpush1.xpose.msra.mxu0 0.0
    %1804 = vmatprep.subr.mxu0 0.0
    %1805 = vmatpush1.xpose.msra.mxu0 0.0
    %1806 = vmatprep.subr.mxu0 0.0
    %1807 = vmatpush1.xpose.msra.mxu0 0.0
    %1808 = vmatprep.subr.mxu0 0.0
    %1809 = vmatpush1.xpose.msra.mxu0 0.0
    %1810 = vmatprep.subr.mxu0 0.0
    %1811 = vmatpush1.xpose.msra.mxu0 0.0
    %1812 = vmatprep.subr.mxu0 0.0
    %1813 = vmatpush1.xpose.msra.mxu0 0.0
    %1814 = vmatprep.subr.mxu0 0.0
    %1815 = vmatpush1.xpose.msra.mxu0 0.0
    %1816 = vmatprep.subr.mxu0 0.0
    %1817 = vmatpush1.xpose.msra.mxu0 0.0
    %1818 = vmatprep.subr.mxu0 0.0
    %1819 = vmatpush1.xpose.msra.mxu0 0.0
    %1820 = vmatprep.subr.mxu0 0.0
    %1821 = vmatpush1.xpose.msra.mxu0 0.0
    %1822 = vmatprep.subr.mxu0 0.0
    %1823 = vmatpush1.xpose.msra.mxu0 0.0
    %1824 = vmatprep.subr.mxu0 0.0
    %1825 = vmatpush1.xpose.msra.mxu0 0.0
    %1826 = vmatprep.subr.mxu0 0.0
    %1827 = vmatpush1.xpose.msra.mxu0 0.0
    %1828 = vmatprep.subr.mxu0 0.0
    %1829 = vmatpush1.xpose.msra.mxu0 0.0
    %1830 = vmatprep.subr.mxu0 0.0
    %1831 = vmatpush1.xpose.msra.mxu0 0.0
    %1832 = vmatprep.subr.mxu0 0.0
    %1833 = vmatpush1.xpose.msra.mxu0 0.0
    %1834 = vmatprep.subr.mxu0 0.0
    %1835 = vmatpush1.xpose.msra.mxu0 0.0
    %1836 = vmatprep.subr.mxu0 0.0
    %1837 = vmatpush1.xpose.msra.mxu0 0.0
    %1838 = vmatprep.subr.mxu0 0.0
    %1839 = vmatpush1.xpose.msra.mxu0 0.0
    %1840 = vmatprep.subr.mxu0 0.0
    %1841 = vmatpush1.xpose.msra.mxu0 0.0
    %1842 = vmatprep.mubr.f32.mxu0 0.0
    %1843 = vmatmul.mubr.f32.gmra.mrb[0].mxu0 %v1770
    %v1844 = vpop.f32.mrb[0].mxu0
    %v1845 = vadd.f32 0.0, %v1844
    %v1846 = vpop.f32.mrb[0].mxu0
    %1847 = vdwg.mxu0
    %1849 = vrot.lane.b32.xlu0 %v1103, 112
    %v1850 = vpop.permute.xlu0 %1849
    %v1851 = vsel %vm676, %v1850, 0
    %v1854 = vsel %vm676, %v1670, 0
    %v1857 = vsel %vm676, %v1672, 0
    %1859 = vmatprep.subr.mxu0 0.0
    %1860 = vmatpush1.xpose.msra.mxu0 %v1854
    %1861 = vmatprep.subr.mxu0 0.0
    %1862 = vmatpush1.xpose.msra.mxu0 %v1857
    %1863 = vmatprep.subr.mxu0 0.0
    %1864 = vmatpush1.xpose.msra.mxu0 0.0
    %1865 = vmatprep.subr.mxu0 0.0
    %1866 = vmatpush1.xpose.msra.mxu0 0.0
    %1867 = vmatprep.subr.mxu0 0.0
    %1868 = vmatpush1.xpose.msra.mxu0 0.0
    %1869 = vmatprep.subr.mxu0 0.0
    %1870 = vmatpush1.xpose.msra.mxu0 0.0
    %1871 = vmatprep.subr.mxu0 0.0
    %1872 = vmatpush1.xpose.msra.mxu0 0.0
    %1873 = vmatprep.subr.mxu0 0.0
    %1874 = vmatpush1.xpose.msra.mxu0 0.0
    %1875 = vmatprep.subr.mxu0 0.0
    %1876 = vmatpush1.xpose.msra.mxu0 0.0
    %1877 = vmatprep.subr.mxu0 0.0
    %1878 = vmatpush1.xpose.msra.mxu0 0.0
    %1879 = vmatprep.subr.mxu0 0.0
    %1880 = vmatpush1.xpose.msra.mxu0 0.0
    %1881 = vmatprep.subr.mxu0 0.0
    %1882 = vmatpush1.xpose.msra.mxu0 0.0
    %1883 = vmatprep.subr.mxu0 0.0
    %1884 = vmatpush1.xpose.msra.mxu0 0.0
    %1885 = vmatprep.subr.mxu0 0.0
    %1886 = vmatpush1.xpose.msra.mxu0 0.0
    %1887 = vmatprep.subr.mxu0 0.0
    %1888 = vmatpush1.xpose.msra.mxu0 0.0
    %1889 = vmatprep.subr.mxu0 0.0
    %1890 = vmatpush1.xpose.msra.mxu0 0.0
    %1891 = vmatprep.subr.mxu0 0.0
    %1892 = vmatpush1.xpose.msra.mxu0 0.0
    %1893 = vmatprep.subr.mxu0 0.0
    %1894 = vmatpush1.xpose.msra.mxu0 0.0
    %1895 = vmatprep.subr.mxu0 0.0
    %1896 = vmatpush1.xpose.msra.mxu0 0.0
    %1897 = vmatprep.subr.mxu0 0.0
    %1898 = vmatpush1.xpose.msra.mxu0 0.0
    %1899 = vmatprep.subr.mxu0 0.0
    %1900 = vmatpush1.xpose.msra.mxu0 0.0
    %1901 = vmatprep.subr.mxu0 0.0
    %1902 = vmatpush1.xpose.msra.mxu0 0.0
    %1903 = vmatprep.subr.mxu0 0.0
    %1904 = vmatpush1.xpose.msra.mxu0 0.0
    %1905 = vmatprep.subr.mxu0 0.0
    %1906 = vmatpush1.xpose.msra.mxu0 0.0
    %1907 = vmatprep.subr.mxu0 0.0
    %1908 = vmatpush1.xpose.msra.mxu0 0.0
    %1909 = vmatprep.subr.mxu0 0.0
    %1910 = vmatpush1.xpose.msra.mxu0 0.0
    %1911 = vmatprep.subr.mxu0 0.0
    %1912 = vmatpush1.xpose.msra.mxu0 0.0
    %1913 = vmatprep.subr.mxu0 0.0
    %1914 = vmatpush1.xpose.msra.mxu0 0.0
    %1915 = vmatprep.subr.mxu0 0.0
    %1916 = vmatpush1.xpose.msra.mxu0 0.0
    %1917 = vmatprep.subr.mxu0 0.0
    %1918 = vmatpush1.xpose.msra.mxu0 0.0
    %1919 = vmatprep.subr.mxu0 0.0
    %1920 = vmatpush1.xpose.msra.mxu0 0.0
    %1921 = vmatprep.subr.mxu0 0.0
    %1922 = vmatpush1.xpose.msra.mxu0 0.0
    %1923 = vmatprep.mubr.f32.mxu0 0.0
    %1924 = vmatmul.mubr.f32.gmra.mrb[0].mxu0 %v1851
    %v1925 = vpop.f32.mrb[0].mxu0
    %v1926 = vadd.f32 0.0, %v1925
    %v1927 = vpop.f32.mrb[0].mxu0
    %1928 = vdwg.mxu0
    %1930 = vrot.lane.b32.xlu0 %v1104, 112
    %v1931 = vpop.permute.xlu0 %1930
    %v1932 = vsel %vm676, %v1931, 0
    %v1935 = vsel %vm676, %v1674, 0
    %v1938 = vsel %vm676, %v1676, 0
    %1940 = vmatprep.subr.mxu0 0.0
    %1941 = vmatpush1.xpose.msra.mxu0 %v1935
    %1942 = vmatprep.subr.mxu0 0.0
    %1943 = vmatpush1.xpose.msra.mxu0 %v1938
    %1944 = vmatprep.subr.mxu0 0.0
    %1945 = vmatpush1.xpose.msra.mxu0 0.0
    %1946 = vmatprep.subr.mxu0 0.0
    %1947 = vmatpush1.xpose.msra.mxu0 0.0
    %1948 = vmatprep.subr.mxu0 0.0
    %1949 = vmatpush1.xpose.msra.mxu0 0.0
    %1950 = vmatprep.subr.mxu0 0.0
    %1951 = vmatpush1.xpose.msra.mxu0 0.0
    %1952 = vmatprep.subr.mxu0 0.0
    %1953 = vmatpush1.xpose.msra.mxu0 0.0
    %1954 = vmatprep.subr.mxu0 0.0
    %1955 = vmatpush1.xpose.msra.mxu0 0.0
    %1956 = vmatprep.subr.mxu0 0.0
    %1957 = vmatpush1.xpose.msra.mxu0 0.0
    %1958 = vmatprep.subr.mxu0 0.0
    %1959 = vmatpush1.xpose.msra.mxu0 0.0
    %1960 = vmatprep.subr.mxu0 0.0
    %1961 = vmatpush1.xpose.msra.mxu0 0.0
    %1962 = vmatprep.subr.mxu0 0.0
    %1963 = vmatpush1.xpose.msra.mxu0 0.0
    %1964 = vmatprep.subr.mxu0 0.0
    %1965 = vmatpush1.xpose.msra.mxu0 0.0
    %1966 = vmatprep.subr.mxu0 0.0
    %1967 = vmatpush1.xpose.msra.mxu0 0.0
    %1968 = vmatprep.subr.mxu0 0.0
    %1969 = vmatpush1.xpose.msra.mxu0 0.0
    %1970 = vmatprep.subr.mxu0 0.0
    %1971 = vmatpush1.xpose.msra.mxu0 0.0
    %1972 = vmatprep.subr.mxu0 0.0
    %1973 = vmatpush1.xpose.msra.mxu0 0.0
    %1974 = vmatprep.subr.mxu0 0.0
    %1975 = vmatpush1.xpose.msra.mxu0 0.0
    %1976 = vmatprep.subr.mxu0 0.0
    %1977 = vmatpush1.xpose.msra.mxu0 0.0
    %1978 = vmatprep.subr.mxu0 0.0
    %1979 = vmatpush1.xpose.msra.mxu0 0.0
    %1980 = vmatprep.subr.mxu0 0.0
    %1981 = vmatpush1.xpose.msra.mxu0 0.0
    %1982 = vmatprep.subr.mxu0 0.0
    %1983 = vmatpush1.xpose.msra.mxu0 0.0
    %1984 = vmatprep.subr.mxu0 0.0
    %1985 = vmatpush1.xpose.msra.mxu0 0.0
    %1986 = vmatprep.subr.mxu0 0.0
    %1987 = vmatpush1.xpose.msra.mxu0 0.0
    %1988 = vmatprep.subr.mxu0 0.0
    %1989 = vmatpush1.xpose.msra.mxu0 0.0
    %1990 = vmatprep.subr.mxu0 0.0
    %1991 = vmatpush1.xpose.msra.mxu0 0.0
    %1992 = vmatprep.subr.mxu0 0.0
    %1993 = vmatpush1.xpose.msra.mxu0 0.0
    %1994 = vmatprep.subr.mxu0 0.0
    %1995 = vmatpush1.xpose.msra.mxu0 0.0
    %1996 = vmatprep.subr.mxu0 0.0
    %1997 = vmatpush1.xpose.msra.mxu0 0.0
    %1998 = vmatprep.subr.mxu0 0.0
    %1999 = vmatpush1.xpose.msra.mxu0 0.0
    %2000 = vmatprep.subr.mxu0 0.0
    %2001 = vmatpush1.xpose.msra.mxu0 0.0
    %2002 = vmatprep.subr.mxu0 0.0
    %2003 = vmatpush1.xpose.msra.mxu0 0.0
    %2004 = vmatprep.mubr.f32.mxu0 0.0
    %2005 = vmatmul.mubr.f32.gmra.mrb[0].mxu0 %v1932
    %v2006 = vpop.f32.mrb[0].mxu0
    %v2007 = vadd.f32 0.0, %v2006
    %v2008 = vpop.f32.mrb[0].mxu0
    %2009 = vdwg.mxu0
    %2014 = vrot.lane.b32.xlu0 %v1764, 16
    %v2015 = vpop.permute.xlu0 %2014
    %2016 = vrot.lane.b32.xlu0 %v1845, 16
    %v2017 = vpop.permute.xlu0 %2016
    %2018 = vrot.lane.b32.xlu0 %v1926, 16
    %v2019 = vpop.permute.xlu0 %2018
    %2020 = vrot.lane.b32.xlu0 %v2007, 16
    %v2021 = vpop.permute.xlu0 %2020
    %vm2026 = vcmask 261248
    %2027 = vst.msk [vmem:[#allocation3] sm:$0xff] %vm2026, %v2015
    %2028 = vst.msk [vmem:[#allocation3 + $0x8] sm:$0xff] %vm2026, %v2017
    %2029 = vst.msk [vmem:[#allocation3 + $0x10] sm:$0xff] %vm2026, %v2019
    %2030 = vst.msk [vmem:[#allocation3 + $0x18] sm:$0xff] %vm2026, %v2021
    %v2031 = vld [vmem:[#allocation3] sm:$0xff]
    %v2032 = vld [vmem:[#allocation3 + $0x8] sm:$0xff]
    %v2033 = vld [vmem:[#allocation3 + $0x10] sm:$0xff]
    %v2034 = vld [vmem:[#allocation3 + $0x18] sm:$0xff]
    %v2035 = vld [vmem:[%s2] sm:$0xff]
    %v2036 = vld [vmem:[%s2 + $0x8] sm:$0xff]
    %v2037 = vld [vmem:[%s2 + $0x10] sm:$0xff]
    %v2038 = vld [vmem:[%s2 + $0x18] sm:$0xff]
    %v2039 = vld [vmem:[%s3] sm:$0xff]
    %v2040 = vld [vmem:[%s3 + $0x8] sm:$0xff]
    %v2041 = vld [vmem:[%s3 + $0x10] sm:$0xff]
    %v2042 = vld [vmem:[%s3 + $0x18] sm:$0xff]
    %2044 = vset.pattern.permute.xlu0 0
    %2045 = vperm.xlu0 %2044, %v2039
    %v2046 = vpop.permute.xlu0 %2045
    %2049 = vset.pattern.permute.xlu0 0
    %2050 = vperm.xlu0 %2049, %v2040
    %v2051 = vpop.permute.xlu0 %2050
    %2054 = vset.pattern.permute.xlu0 0
    %2055 = vperm.xlu0 %2054, %v2041
    %v2056 = vpop.permute.xlu0 %2055
    %2059 = vset.pattern.permute.xlu0 0
    %2060 = vperm.xlu0 %2059, %v2042
    %v2061 = vpop.permute.xlu0 %2060
    %v2064 = vsel %vm37, %v2035, 0
    %v2067 = vsel %vm37, %v2036, 0
    %v2070 = vsel %vm37, %v2037, 0
    %v2073 = vsel %vm37, %v2038, 0
    %2075 = vmatprep.subr.mxu0 0.0
    %2076 = vmatpush1.msra.mxu0 %v2031
    %2077 = vmatprep.subr.mxu0 0.0
    %2078 = vmatpush1.msra.mxu0 %v2032
    %2079 = vmatprep.subr.mxu0 0.0
    %2080 = vmatpush1.msra.mxu0 %v2033
    %2081 = vmatprep.subr.mxu0 0.0
    %2082 = vmatpush1.msra.mxu0 %v2034
    %2083 = vmatprep.subr.mxu0 0.0
    %2084 = vmatpush1.msra.mxu0 0.0
    %2085 = vmatprep.subr.mxu0 0.0
    %2086 = vmatpush1.msra.mxu0 0.0
    %2087 = vmatprep.subr.mxu0 0.0
    %2088 = vmatpush1.msra.mxu0 0.0
    %2089 = vmatprep.subr.mxu0 0.0
    %2090 = vmatpush1.msra.mxu0 0.0
    %2091 = vmatprep.subr.mxu0 0.0
    %2092 = vmatpush1.msra.mxu0 0.0
    %2093 = vmatprep.subr.mxu0 0.0
    %2094 = vmatpush1.msra.mxu0 0.0
    %2095 = vmatprep.subr.mxu0 0.0
    %2096 = vmatpush1.msra.mxu0 0.0
    %2097 = vmatprep.subr.mxu0 0.0
    %2098 = vmatpush1.msra.mxu0 0.0
    %2099 = vmatprep.subr.mxu0 0.0
    %2100 = vmatpush1.msra.mxu0 0.0
    %2101 = vmatprep.subr.mxu0 0.0
    %2102 = vmatpush1.msra.mxu0 0.0
    %2103 = vmatprep.subr.mxu0 0.0
    %2104 = vmatpush1.msra.mxu0 0.0
    %2105 = vmatprep.subr.mxu0 0.0
    %2106 = vmatpush1.msra.mxu0 0.0
    %2107 = vmatprep.subr.mxu0 0.0
    %2108 = vmatpush1.msra.mxu0 0.0
    %2109 = vmatprep.subr.mxu0 0.0
    %2110 = vmatpush1.msra.mxu0 0.0
    %2111 = vmatprep.subr.mxu0 0.0
    %2112 = vmatpush1.msra.mxu0 0.0
    %2113 = vmatprep.subr.mxu0 0.0
    %2114 = vmatpush1.msra.mxu0 0.0
    %2115 = vmatprep.subr.mxu0 0.0
    %2116 = vmatpush1.msra.mxu0 0.0
    %2117 = vmatprep.subr.mxu0 0.0
    %2118 = vmatpush1.msra.mxu0 0.0
    %2119 = vmatprep.subr.mxu0 0.0
    %2120 = vmatpush1.msra.mxu0 0.0
    %2121 = vmatprep.subr.mxu0 0.0
    %2122 = vmatpush1.msra.mxu0 0.0
    %2123 = vmatprep.subr.mxu0 0.0
    %2124 = vmatpush1.msra.mxu0 0.0
    %2125 = vmatprep.subr.mxu0 0.0
    %2126 = vmatpush1.msra.mxu0 0.0
    %2127 = vmatprep.subr.mxu0 0.0
    %2128 = vmatpush1.msra.mxu0 0.0
    %2129 = vmatprep.subr.mxu0 0.0
    %2130 = vmatpush1.msra.mxu0 0.0
    %2131 = vmatprep.subr.mxu0 0.0
    %2132 = vmatpush1.msra.mxu0 0.0
    %2133 = vmatprep.subr.mxu0 0.0
    %2134 = vmatpush1.msra.mxu0 0.0
    %2135 = vmatprep.subr.mxu0 0.0
    %2136 = vmatpush1.msra.mxu0 0.0
    %2137 = vmatprep.subr.mxu0 0.0
    %2138 = vmatpush1.msra.mxu0 0.0
    %2139 = vmatprep.mubr.f32.mxu0 0.0
    %2140 = vmatmul.mubr.f32.gmra.mrb[0].mxu0 %v2064
    %v2141 = vpop.f32.mrb[0].mxu0
    %v2142 = vadd.f32 %v2046, %v2141
    %v2143 = vpop.f32.mrb[0].mxu0
    %2144 = vmatprep.mubr.f32.mxu0 0.0
    %2145 = vmatmul.mubr.f32.gmra.mrb[0].mxu0 %v2067
    %v2146 = vpop.f32.mrb[0].mxu0
    %v2147 = vadd.f32 %v2051, %v2146
    %v2148 = vpop.f32.mrb[0].mxu0
    %2149 = vmatprep.mubr.f32.mxu0 0.0
    %2150 = vmatmul.mubr.f32.gmra.mrb[0].mxu0 %v2070
    %v2151 = vpop.f32.mrb[0].mxu0
    %v2152 = vadd.f32 %v2056, %v2151
    %v2153 = vpop.f32.mrb[0].mxu0
    %2154 = vmatprep.mubr.f32.mxu0 0.0
    %2155 = vmatmul.mubr.f32.gmra.mrb[0].mxu0 %v2073
    %v2156 = vpop.f32.mrb[0].mxu0
    %v2157 = vadd.f32 %v2061, %v2156
    %v2158 = vpop.f32.mrb[0].mxu0
    %2159 = vdwg.mxu0
    %2160 = vst.msk [vmem:[#allocation4] sm:$0xff] %vm37, %v2142
    %2161 = vst.msk [vmem:[#allocation4 + $0x8] sm:$0xff] %vm37, %v2147
    %2162 = vst.msk [vmem:[#allocation4 + $0x10] sm:$0xff] %vm37, %v2152
    %2163 = vst.msk [vmem:[#allocation4 + $0x18] sm:$0xff] %vm37, %v2157
    // Predicated region
    $region18: #{tpu_custom_call.1} parent=1 // pred_check
      _
    $region19: #{tpu_custom_call.1} parent=1 // pred_check_branch
      %2165 = sbr.rel (0) target = $region21
    $region20: #{tpu_custom_call.1} parent=1 // pred_region
      %s2167 = ssub.s32 512, 512
      %2168 = vsyncadd [#allocation5], %s2167
      %s2169 = sshll.u32 [#allocation4], 4
      %s2170 = int_to_ptr.vmem [resolvable:$true] %s2169
      %2175 = dma.vmem_to_hbm [thread:$0]  %s2170, 512, %s4, [#allocation5], 128, 128, 8
    $region21: #{tpu_custom_call.1} parent=1 // pred_fallthru
      _
    // Predicated region
    $region22: #{tpu_custom_call.1} parent=1 // pred_check
      _
    $region23: #{tpu_custom_call.1} parent=1 // pred_check_branch
      %2177 = sbr.rel (0) target = $region25
    $region24: #{tpu_custom_call.1} parent=1 // pred_region
      %s2179 = ssub.s32 2048, 2048
      %2180 = vsyncadd [#allocation7], %s2179
      %s2181 = sshll.u32 [#allocation6], 4
      %s2182 = int_to_ptr.vmem [resolvable:$true] %s2181
      %2187 = dma.vmem_to_hbm [thread:$0]  %s2182, 2048, %s5, [#allocation7], 128, 128, 8
    $region25: #{tpu_custom_call.1} parent=1 // pred_fallthru
      _
    // Predicated region
    $region26: #{tpu_custom_call.1} parent=1 // pred_check
      _
    $region27: #{tpu_custom_call.1} parent=1 // pred_check_branch
      %2189 = sbr.rel (0) target = $region29
    $region28: #{tpu_custom_call.1} parent=1 // pred_region
      %2190 = dma.done [#allocation5], 512
    $region29: #{tpu_custom_call.1} parent=1 // pred_fallthru
      _
    // Predicated region
    $region30: #{tpu_custom_call.1} parent=1 // pred_check
      _
    $region31: #{tpu_custom_call.1} parent=1 // pred_check_branch
      %2192 = sbr.rel (0) target = $region33
    $region32: #{tpu_custom_call.1} parent=1 // pred_region
      %2193 = dma.done [#allocation7], 2048
    $region33: #{tpu_custom_call.1} parent=1 // pred_fallthru
      _
    %2194 = vsyncpa [#allocation5], 1
    %2195 = vsyncpa [#allocation7], 1

</llo_original>
